<compile_context>
chip_gen: v7x
topology: tpu7x:2x2x1
jax: 0.10.0
libtpu: 0.0.40
codegen_flags: <defaults>
</compile_context>

<pallas_src>
import jax
import jax.numpy as jnp
from jax.experimental import pallas as pl
from jax.experimental.pallas import tpu as pltpu

# ---- small config (consistent with the module's __init__ shape relations) ----
B, L, H, NH, V = 2, 8, 32, 4, 64       # batch, seq, hidden, heads, vocab
DH = H // NH                           # per-head dim
FF = 4 * H                             # feed-forward hidden
BL = B * L
VPAD = 128                             # MLM vocab padded to full lane width
NEG = -1e9
LN_EPS = 1e-6                          # matches BERT-pytorch custom LayerNorm


# ---------------------------------------------------------------------------
# Fused Pallas kernel: encoder layer + MLM head + NSP head
# ---------------------------------------------------------------------------
def bert_fused_kernel(x_ref, mask_ref,
                      qkv_ref, attn_ref, ln_ref, ff1_ref, ff2_ref,
                      mlm_ref, nsp_ref,
                      nsp_out_ref, mlm_out_ref):
    x = x_ref[...].astype(jnp.float32)                      # (B*L, H)

    # ---- fused Q/K/V projection: one (BL,H) x (H,3H) matmul ----
    qkv = jnp.dot(x, qkv_ref[:H, :],
                  preferred_element_type=jnp.float32) + qkv_ref[H:H + 1, :]

    # split into per-(head, batch) blocks; batch index z = h * B + b
    def split_heads(base):
        return jnp.stack(
            [qkv[b * L:(b + 1) * L, base + h * DH: base + (h + 1) * DH]
             for h in range(NH) for b in range(B)], axis=0)  # (NH*B, L, DH)

    qh = split_heads(0)
    kh = split_heads(H)
    vh = split_heads(2 * H)

    # ---- attention: all (head, batch) pairs in one batched contraction ----
    scale = 1.0 / jnp.sqrt(jnp.float32(DH))
    scores = jnp.einsum('zqd,zkd->zqk', qh, kh,
                        preferred_element_type=jnp.float32) * scale
    scores = scores + mask_ref[...]                          # (NH*B, 1, L) add-mask
    m = jnp.max(scores, axis=-1, keepdims=True)
    p = jnp.exp(scores - m)
    p = p * pl.reciprocal(jnp.sum(p, axis=-1, keepdims=True), approx=True)
    ctx = jnp.einsum('zqk,zkd->zqd', p, vh,
                     preferred_element_type=jnp.float32)     # (NH*B, L, DH)

    # merge heads back to (BL, H), head-major along lanes (matches torch concat)
    ctx2 = jnp.concatenate(
        [jnp.concatenate([ctx[h * B + b] for b in range(B)], axis=0)
         for h in range(NH)], axis=-1)                       # (BL, H)

    attn_out = jnp.dot(ctx2, attn_ref[:H, :],
                       preferred_element_type=jnp.float32) + attn_ref[H:H + 1, :]

    def layer_norm(y, g, b):
        mu = jnp.mean(y, axis=-1, keepdims=True)
        var = jnp.mean((y - mu) ** 2, axis=-1, keepdims=True)
        return (y - mu) * jax.lax.rsqrt(var + LN_EPS) * g + b

    h1 = layer_norm(x + attn_out, ln_ref[0:1, :], ln_ref[1:2, :])

    ff = jnp.dot(h1, ff1_ref[:H, :],
                 preferred_element_type=jnp.float32) + ff1_ref[H:H + 1, :]
    ff = jax.nn.gelu(ff, approximate=True)
    ff = jnp.dot(ff, ff2_ref[:FF, :],
                 preferred_element_type=jnp.float32) + ff2_ref[FF:FF + 1, :]

    h2 = layer_norm(h1 + ff, ln_ref[2:3, :], ln_ref[3:4, :])  # (BL, H)

    # ---- MLM head: lane-dense padded logits; pad bias = -1e9 so the
    #      log_softmax over the real vocab is unchanged ----
    mlm_logits = jnp.dot(h2, mlm_ref[:H, :],
                         preferred_element_type=jnp.float32) + mlm_ref[H:H + 1, :]
    mm = jnp.max(mlm_logits, axis=-1, keepdims=True)
    mz = mlm_logits - mm
    mlse = jnp.log(jnp.sum(jnp.exp(mz), axis=-1, keepdims=True))
    mlm_out_ref[...] = (mz - mlse).astype(mlm_out_ref.dtype)

    # ---- NSP head on the [CLS] rows (row 0 of every sequence) ----
    cls = jnp.concatenate([h2[b * L:b * L + 1, :] for b in range(B)], axis=0)
    nsp_logits = jnp.dot(cls, nsp_ref[:H, :],
                         preferred_element_type=jnp.float32) + nsp_ref[H:H + 1, :]
    nm = jnp.max(nsp_logits, axis=-1, keepdims=True)
    nz = nsp_logits - nm
    nlse = jnp.log(jnp.sum(jnp.exp(nz), axis=-1, keepdims=True))
    nsp_out_ref[...] = (nz - nlse).astype(nsp_out_ref.dtype)


# ---------------------------------------------------------------------------
# Wrapper
# ---------------------------------------------------------------------------
def _full_spec(arr):
    nd = arr.ndim
    return pl.BlockSpec(arr.shape, lambda i, _nd=nd: (0,) * _nd)


def run_bert_pretrain_fused(x_flat, maskz, pk):
    operands = [x_flat, maskz, pk["qkv"], pk["attn"], pk["ln"],
                pk["ff1"], pk["ff2"], pk["mlm"], pk["nsp"]]
    nsp_out, mlm_pad = pl.pallas_call(
        bert_fused_kernel,
        out_shape=(jax.ShapeDtypeStruct((B, 2), jnp.float32),
                   jax.ShapeDtypeStruct((BL, VPAD), jnp.float32)),
        grid=(1,),
        in_specs=[_full_spec(a) for a in operands],
        out_specs=(pl.BlockSpec((B, 2), lambda i: (0, 0)),
                   pl.BlockSpec((BL, VPAD), lambda i: (0, 0))),
        compiler_params=pltpu.CompilerParams(
            dimension_semantics=("arbitrary",)),
    )(*operands)
    return nsp_out, mlm_pad


def init_params(key):
    ks = jax.random.split(key, 16)
    s = 0.02
    return {
        # embedding tables
        "tok_emb": s * jax.random.normal(ks[0], (V, H), jnp.float32),
        # TODO(synk): reference EmbeddingLayer may use sinusoidal positional
        # embedding; a learned table is used here (synthetic init).
        "pos_emb": s * jax.random.normal(ks[1], (L, H), jnp.float32),
        "seg_emb": s * jax.random.normal(ks[2], (3, H), jnp.float32)
                      .at[0].set(0.0),                       # padding_idx=0
        # encoder layer (only the first layer runs in the reference forward)
        "wq": s * jax.random.normal(ks[3], (H, H), jnp.float32),
        "bq": jnp.zeros((1, H), jnp.float32),
        "wk": s * jax.random.normal(ks[4], (H, H), jnp.float32),
        "bk": jnp.zeros((1, H), jnp.float32),
        "wv": s * jax.random.normal(ks[5], (H, H), jnp.float32),
        "bv": jnp.zeros((1, H), jnp.float32),
        "wo": s * jax.random.normal(ks[6], (H, H), jnp.float32),
        "bo": jnp.zeros((1, H), jnp.float32),
        "ln1_g": jnp.ones((1, H), jnp.float32),
        "ln1_b": jnp.zeros((1, H), jnp.float32),
        "w1": s * jax.random.normal(ks[7], (H, FF), jnp.float32),
        "b1": jnp.zeros((1, FF), jnp.float32),
        "w2": s * jax.random.normal(ks[8], (FF, H), jnp.float32),
        "b2": jnp.zeros((1, H), jnp.float32),
        "ln2_g": jnp.ones((1, H), jnp.float32),
        "ln2_b": jnp.zeros((1, H), jnp.float32),
        # heads
        "w_mlm": s * jax.random.normal(ks[9], (H, V), jnp.float32),
        "b_mlm": jnp.zeros((1, V), jnp.float32),
        "w_nsp": s * jax.random.normal(ks[10], (H, 2), jnp.float32),
        "b_nsp": jnp.zeros((1, 2), jnp.float32),
    }


def pack_params(p):
    """Pack per-operand weights into a few larger arrays (weight rows + bias row)."""
    w_qkv = jnp.concatenate([p["wq"], p["wk"], p["wv"]], axis=1)     # (H, 3H)
    b_qkv = jnp.concatenate([p["bq"], p["bk"], p["bv"]], axis=1)     # (1, 3H)
    w_mlm_pad = jnp.pad(p["w_mlm"], ((0, 0), (0, VPAD - V)))
    b_mlm_pad = jnp.pad(p["b_mlm"], ((0, 0), (0, VPAD - V)), constant_values=NEG)
    return {
        "qkv": jnp.concatenate([w_qkv, b_qkv], axis=0),              # (H+1, 3H)
        "attn": jnp.concatenate([p["wo"], p["bo"]], axis=0),         # (H+1, H)
        "ln": jnp.concatenate([p["ln1_g"], p["ln1_b"],
                               p["ln2_g"], p["ln2_b"]], axis=0),     # (4, H)
        "ff1": jnp.concatenate([p["w1"], p["b1"]], axis=0),          # (H+1, FF)
        "ff2": jnp.concatenate([p["w2"], p["b2"]], axis=0),          # (FF+1, H)
        "mlm": jnp.concatenate([w_mlm_pad, b_mlm_pad], axis=0),      # (H+1, VPAD)
        "nsp": jnp.concatenate([p["w_nsp"], p["b_nsp"]], axis=0),    # (H+1, 2)
    }


def bert_pretrain_forward(token_ids, segment_ids, p):
    # ---- glue (embedding gather + mask construction) in plain JAX ----
    emb = (jnp.take(p["tok_emb"], token_ids, axis=0)
           + p["pos_emb"][None, :, :]
           + jnp.take(p["seg_emb"], segment_ids, axis=0))            # (B, L, H)
    # additive key mask; replicated per head so batch index inside the kernel
    # is z = head * B + b
    addmask = jnp.where(token_ids > 0, 0.0, NEG).astype(jnp.float32)  # (B, L)
    maskz = jnp.tile(addmask, (NH, 1))[:, None, :]                   # (NH*B, 1, L)

    pk = pack_params(p)
    x_flat = emb.reshape(BL, H)

    # ---- single fused Pallas kernel for encoder + NSP + MLM ----
    nsp_out, mlm_pad = run_bert_pretrain_fused(x_flat, maskz, pk)
    mlm_out = mlm_pad[:, :V].reshape(B, L, V)                        # strip pad
    return nsp_out, mlm_out


if __name__ == "__main__":
    key = jax.random.PRNGKey(0)
    k_tok, k_par = jax.random.split(key)

    token_ids = jax.random.randint(k_tok, (B, L), 1, V, dtype=jnp.int32)
    # pad the tail of each sequence to exercise the attention mask
    token_ids = token_ids.at[:, L - 2:].set(0)
    segment_ids = jnp.where(
        token_ids > 0,
        jnp.where(jnp.arange(L)[None, :] < L // 2, 1, 2),
        0).astype(jnp.int32)

    params = init_params(k_par)

    nsp_logp, mlm_logp = jax.jit(bert_pretrain_forward)(
        token_ids, segment_ids, params)
    jax.block_until_ready((nsp_logp, mlm_logp))

    assert nsp_logp.shape == (B, 2)
    assert mlm_logp.shape == (B, L, V)
    # log-softmax rows must sum to 1 in prob space
    assert jnp.allclose(jnp.sum(jnp.exp(nsp_logp), -1), 1.0, atol=1e-4)
    assert jnp.allclose(jnp.sum(jnp.exp(mlm_logp), -1), 1.0, atol=1e-4)
    print("KERNEL_OK")
</pallas_src>

<mosaic_0001>
module attributes {stable_mosaic.version = 11 : i64} {
  func.func @bert_fused_kernel(%arg0: i32, %arg1: memref<16x32xf32, #tpu.memory_space<vmem>>, %arg2: memref<8x1x8xf32, #tpu.memory_space<vmem>>, %arg3: memref<33x96xf32, #tpu.memory_space<vmem>>, %arg4: memref<33x32xf32, #tpu.memory_space<vmem>>, %arg5: memref<4x32xf32, #tpu.memory_space<vmem>>, %arg6: memref<33x128xf32, #tpu.memory_space<vmem>>, %arg7: memref<129x32xf32, #tpu.memory_space<vmem>>, %arg8: memref<33x128xf32, #tpu.memory_space<vmem>>, %arg9: memref<33x2xf32, #tpu.memory_space<vmem>>, %arg10: memref<2x2xf32, #tpu.memory_space<vmem>>, %arg11: memref<16x128xf32, #tpu.memory_space<vmem>>) attributes {dimension_semantics = [#tpu.dimension_semantics<arbitrary>], iteration_bounds = array<i64: 1>, scalar_prefetch = 0 : i64, scratch_operands = 0 : i64, tpu.core_type = #tpu.core_type<tc>, window_params = [{pipeline_mode = #tpu.pipeline_mode<synchronous>, transform_indices = @transform_0, window_bounds = array<i64: 16, 32>}, {pipeline_mode = #tpu.pipeline_mode<synchronous>, transform_indices = @transform_1, window_bounds = array<i64: 8, 1, 8>}, {pipeline_mode = #tpu.pipeline_mode<synchronous>, transform_indices = @transform_2, window_bounds = array<i64: 33, 96>}, {pipeline_mode = #tpu.pipeline_mode<synchronous>, transform_indices = @transform_3, window_bounds = array<i64: 33, 32>}, {pipeline_mode = #tpu.pipeline_mode<synchronous>, transform_indices = @transform_4, window_bounds = array<i64: 4, 32>}, {pipeline_mode = #tpu.pipeline_mode<synchronous>, transform_indices = @transform_5, window_bounds = array<i64: 33, 128>}, {pipeline_mode = #tpu.pipeline_mode<synchronous>, transform_indices = @transform_6, window_bounds = array<i64: 129, 32>}, {pipeline_mode = #tpu.pipeline_mode<synchronous>, transform_indices = @transform_7, window_bounds = array<i64: 33, 128>}, {pipeline_mode = #tpu.pipeline_mode<synchronous>, transform_indices = @transform_8, window_bounds = array<i64: 33, 2>}, {pipeline_mode = #tpu.pipeline_mode<synchronous>, transform_indices = @transform_9, window_bounds = array<i64: 2, 2>}, {pipeline_mode = #tpu.pipeline_mode<synchronous>, transform_indices = @transform_10, window_bounds = array<i64: 16, 128>}]} {
    %c0 = arith.constant 0 : index
    %c0_0 = arith.constant 0 : index
    %0 = vector.load %arg1[%c0, %c0_0] : memref<16x32xf32, #tpu.memory_space<vmem>>, vector<16x32xf32>
    %c0_1 = arith.constant 0 : index
    %c0_2 = arith.constant 0 : index
    %1 = vector.load %arg3[%c0_1, %c0_2] : memref<33x96xf32, #tpu.memory_space<vmem>>, vector<32x96xf32>
    %cst = arith.constant dense<0.000000e+00> : vector<16x96xf32>
    %2 = tpu.matmul %0, %1, %cst {dimension_numbers = #tpu.dot_dimension_numbers<[1], [0], [0], [1], [0, 0, 1, 1], [], []>} : vector<16x32xf32>, vector<32x96xf32>, vector<16x96xf32> -> vector<16x96xf32>
    %c32 = arith.constant 32 : index
    %c0_3 = arith.constant 0 : index
    %3 = vector.load %arg3[%c32, %c0_3] : memref<33x96xf32, #tpu.memory_space<vmem>>, vector<1x96xf32>
    %4 = vector.broadcast %3 : vector<1x96xf32> to vector<16x96xf32>
    %5 = arith.addf %2, %4 : vector<16x96xf32>
    %6 = vector.extract_strided_slice %5 {offsets = [0, 0], sizes = [8, 8], strides = [1, 1]} : vector<16x96xf32> to vector<8x8xf32>
    %7 = vector.extract_strided_slice %5 {offsets = [8, 0], sizes = [8, 8], strides = [1, 1]} : vector<16x96xf32> to vector<8x8xf32>
    %8 = vector.extract_strided_slice %5 {offsets = [0, 8], sizes = [8, 8], strides = [1, 1]} : vector<16x96xf32> to vector<8x8xf32>
    %9 = vector.extract_strided_slice %5 {offsets = [8, 8], sizes = [8, 8], strides = [1, 1]} : vector<16x96xf32> to vector<8x8xf32>
    %10 = vector.extract_strided_slice %5 {offsets = [0, 16], sizes = [8, 8], strides = [1, 1]} : vector<16x96xf32> to vector<8x8xf32>
    %11 = vector.extract_strided_slice %5 {offsets = [8, 16], sizes = [8, 8], strides = [1, 1]} : vector<16x96xf32> to vector<8x8xf32>
    %12 = vector.extract_strided_slice %5 {offsets = [0, 24], sizes = [8, 8], strides = [1, 1]} : vector<16x96xf32> to vector<8x8xf32>
    %13 = vector.extract_strided_slice %5 {offsets = [8, 24], sizes = [8, 8], strides = [1, 1]} : vector<16x96xf32> to vector<8x8xf32>
    %14 = vector.shape_cast %6 : vector<8x8xf32> to vector<1x8x8xf32>
    %15 = vector.shape_cast %7 : vector<8x8xf32> to vector<1x8x8xf32>
    %16 = vector.shape_cast %8 : vector<8x8xf32> to vector<1x8x8xf32>
    %17 = vector.shape_cast %9 : vector<8x8xf32> to vector<1x8x8xf32>
    %18 = vector.shape_cast %10 : vector<8x8xf32> to vector<1x8x8xf32>
    %19 = vector.shape_cast %11 : vector<8x8xf32> to vector<1x8x8xf32>
    %20 = vector.shape_cast %12 : vector<8x8xf32> to vector<1x8x8xf32>
    %21 = vector.shape_cast %13 : vector<8x8xf32> to vector<1x8x8xf32>
    %22 = tpu.concatenate %14, %15, %16, %17, %18, %19, %20, %21 in 0 : vector<1x8x8xf32>, vector<1x8x8xf32>, vector<1x8x8xf32>, vector<1x8x8xf32>, vector<1x8x8xf32>, vector<1x8x8xf32>, vector<1x8x8xf32>, vector<1x8x8xf32> -> vector<8x8x8xf32>
    %23 = vector.extract_strided_slice %5 {offsets = [0, 32], sizes = [8, 8], strides = [1, 1]} : vector<16x96xf32> to vector<8x8xf32>
    %24 = vector.extract_strided_slice %5 {offsets = [8, 32], sizes = [8, 8], strides = [1, 1]} : vector<16x96xf32> to vector<8x8xf32>
    %25 = vector.extract_strided_slice %5 {offsets = [0, 40], sizes = [8, 8], strides = [1, 1]} : vector<16x96xf32> to vector<8x8xf32>
    %26 = vector.extract_strided_slice %5 {offsets = [8, 40], sizes = [8, 8], strides = [1, 1]} : vector<16x96xf32> to vector<8x8xf32>
    %27 = vector.extract_strided_slice %5 {offsets = [0, 48], sizes = [8, 8], strides = [1, 1]} : vector<16x96xf32> to vector<8x8xf32>
    %28 = vector.extract_strided_slice %5 {offsets = [8, 48], sizes = [8, 8], strides = [1, 1]} : vector<16x96xf32> to vector<8x8xf32>
    %29 = vector.extract_strided_slice %5 {offsets = [0, 56], sizes = [8, 8], strides = [1, 1]} : vector<16x96xf32> to vector<8x8xf32>
    %30 = vector.extract_strided_slice %5 {offsets = [8, 56], sizes = [8, 8], strides = [1, 1]} : vector<16x96xf32> to vector<8x8xf32>
    %31 = vector.shape_cast %23 : vector<8x8xf32> to vector<1x8x8xf32>
    %32 = vector.shape_cast %24 : vector<8x8xf32> to vector<1x8x8xf32>
    %33 = vector.shape_cast %25 : vector<8x8xf32> to vector<1x8x8xf32>
    %34 = vector.shape_cast %26 : vector<8x8xf32> to vector<1x8x8xf32>
    %35 = vector.shape_cast %27 : vector<8x8xf32> to vector<1x8x8xf32>
    %36 = vector.shape_cast %28 : vector<8x8xf32> to vector<1x8x8xf32>
    %37 = vector.shape_cast %29 : vector<8x8xf32> to vector<1x8x8xf32>
    %38 = vector.shape_cast %30 : vector<8x8xf32> to vector<1x8x8xf32>
    %39 = tpu.concatenate %31, %32, %33, %34, %35, %36, %37, %38 in 0 : vector<1x8x8xf32>, vector<1x8x8xf32>, vector<1x8x8xf32>, vector<1x8x8xf32>, vector<1x8x8xf32>, vector<1x8x8xf32>, vector<1x8x8xf32>, vector<1x8x8xf32> -> vector<8x8x8xf32>
    %40 = vector.extract_strided_slice %5 {offsets = [0, 64], sizes = [8, 8], strides = [1, 1]} : vector<16x96xf32> to vector<8x8xf32>
    %41 = vector.extract_strided_slice %5 {offsets = [8, 64], sizes = [8, 8], strides = [1, 1]} : vector<16x96xf32> to vector<8x8xf32>
    %42 = vector.extract_strided_slice %5 {offsets = [0, 72], sizes = [8, 8], strides = [1, 1]} : vector<16x96xf32> to vector<8x8xf32>
    %43 = vector.extract_strided_slice %5 {offsets = [8, 72], sizes = [8, 8], strides = [1, 1]} : vector<16x96xf32> to vector<8x8xf32>
    %44 = vector.extract_strided_slice %5 {offsets = [0, 80], sizes = [8, 8], strides = [1, 1]} : vector<16x96xf32> to vector<8x8xf32>
    %45 = vector.extract_strided_slice %5 {offsets = [8, 80], sizes = [8, 8], strides = [1, 1]} : vector<16x96xf32> to vector<8x8xf32>
    %46 = vector.extract_strided_slice %5 {offsets = [0, 88], sizes = [8, 8], strides = [1, 1]} : vector<16x96xf32> to vector<8x8xf32>
    %47 = vector.extract_strided_slice %5 {offsets = [8, 88], sizes = [8, 8], strides = [1, 1]} : vector<16x96xf32> to vector<8x8xf32>
    %48 = vector.shape_cast %40 : vector<8x8xf32> to vector<1x8x8xf32>
    %49 = vector.shape_cast %41 : vector<8x8xf32> to vector<1x8x8xf32>
    %50 = vector.shape_cast %42 : vector<8x8xf32> to vector<1x8x8xf32>
    %51 = vector.shape_cast %43 : vector<8x8xf32> to vector<1x8x8xf32>
    %52 = vector.shape_cast %44 : vector<8x8xf32> to vector<1x8x8xf32>
    %53 = vector.shape_cast %45 : vector<8x8xf32> to vector<1x8x8xf32>
    %54 = vector.shape_cast %46 : vector<8x8xf32> to vector<1x8x8xf32>
    %55 = vector.shape_cast %47 : vector<8x8xf32> to vector<1x8x8xf32>
    %56 = tpu.concatenate %48, %49, %50, %51, %52, %53, %54, %55 in 0 : vector<1x8x8xf32>, vector<1x8x8xf32>, vector<1x8x8xf32>, vector<1x8x8xf32>, vector<1x8x8xf32>, vector<1x8x8xf32>, vector<1x8x8xf32>, vector<1x8x8xf32> -> vector<8x8x8xf32>
    %cst_4 = arith.constant 8.000000e+00 : f32
    %57 = math.sqrt %cst_4 : f32
    %cst_5 = arith.constant 1.000000e+00 : f32
    %58 = arith.divf %cst_5, %57 : f32
    "tpu.trace_start"() <{level = 10 : i32, message = "zqd,zkd->zqk"}> : () -> ()
    %cst_6 = arith.constant dense<0.000000e+00> : vector<8x8x8xf32>
    %59 = tpu.matmul %22, %39, %cst_6 {dimension_numbers = #tpu.dot_dimension_numbers<[2], [2], [1], [1], [0, 0, 0, 1, 1, 1], [0], [0]>} : vector<8x8x8xf32>, vector<8x8x8xf32>, vector<8x8x8xf32> -> vector<8x8x8xf32>
    "tpu.trace_stop"() : () -> ()
    %60 = vector.broadcast %58 : f32 to vector<8x8x8xf32>
    %61 = arith.mulf %59, %60 : vector<8x8x8xf32>
    %c0_7 = arith.constant 0 : index
    %c0_8 = arith.constant 0 : index
    %c0_9 = arith.constant 0 : index
    %62 = vector.load %arg2[%c0_7, %c0_8, %c0_9] : memref<8x1x8xf32, #tpu.memory_space<vmem>>, vector<8x1x8xf32>
    %63 = vector.broadcast %62 : vector<8x1x8xf32> to vector<8x8x8xf32>
    %64 = arith.addf %61, %63 : vector<8x8x8xf32>
    %cst_10 = arith.constant dense<0xFF800000> : vector<8x8xf32>
    %65 = vector.multi_reduction <maximumf>, %64, %cst_10 [2] : vector<8x8x8xf32> to vector<8x8xf32>
    %66 = vector.shape_cast %65 : vector<8x8xf32> to vector<8x8x1xf32>
    %67 = vector.broadcast %66 : vector<8x8x1xf32> to vector<8x8x8xf32>
    %68 = arith.subf %64, %67 : vector<8x8x8xf32>
    %69 = math.exp %68 : vector<8x8x8xf32>
    %cst_11 = arith.constant dense<0.000000e+00> : vector<8x8xf32>
    %70 = vector.multi_reduction <add>, %69, %cst_11 [2] : vector<8x8x8xf32> to vector<8x8xf32>
    %71 = vector.shape_cast %70 : vector<8x8xf32> to vector<8x8x1xf32>
    %72 = tpu.reciprocal %71 {approx = true} : vector<8x8x1xf32> -> vector<8x8x1xf32>
    %73 = vector.broadcast %72 : vector<8x8x1xf32> to vector<8x8x8xf32>
    %74 = arith.mulf %69, %73 : vector<8x8x8xf32>
    "tpu.trace_start"() <{level = 10 : i32, message = "zqk,zkd->zqd"}> : () -> ()
    %cst_12 = arith.constant dense<0.000000e+00> : vector<8x8x8xf32>
    %75 = tpu.matmul %74, %56, %cst_12 {dimension_numbers = #tpu.dot_dimension_numbers<[2], [1], [1], [2], [0, 0, 0, 1, 1, 2], [0], [0]>} : vector<8x8x8xf32>, vector<8x8x8xf32>, vector<8x8x8xf32> -> vector<8x8x8xf32>
    "tpu.trace_stop"() : () -> ()
    %76 = vector.extract_strided_slice %75 {offsets = [0, 0, 0], sizes = [1, 8, 8], strides = [1, 1, 1]} : vector<8x8x8xf32> to vector<1x8x8xf32>
    %77 = vector.shape_cast %76 : vector<1x8x8xf32> to vector<8x8xf32>
    %78 = vector.extract_strided_slice %75 {offsets = [1, 0, 0], sizes = [1, 8, 8], strides = [1, 1, 1]} : vector<8x8x8xf32> to vector<1x8x8xf32>
    %79 = vector.shape_cast %78 : vector<1x8x8xf32> to vector<8x8xf32>
    %80 = tpu.concatenate %77, %79 in 0 : vector<8x8xf32>, vector<8x8xf32> -> vector<16x8xf32>
    %81 = vector.extract_strided_slice %75 {offsets = [2, 0, 0], sizes = [1, 8, 8], strides = [1, 1, 1]} : vector<8x8x8xf32> to vector<1x8x8xf32>
    %82 = vector.shape_cast %81 : vector<1x8x8xf32> to vector<8x8xf32>
    %83 = vector.extract_strided_slice %75 {offsets = [3, 0, 0], sizes = [1, 8, 8], strides = [1, 1, 1]} : vector<8x8x8xf32> to vector<1x8x8xf32>
    %84 = vector.shape_cast %83 : vector<1x8x8xf32> to vector<8x8xf32>
    %85 = tpu.concatenate %82, %84 in 0 : vector<8x8xf32>, vector<8x8xf32> -> vector<16x8xf32>
    %86 = vector.extract_strided_slice %75 {offsets = [4, 0, 0], sizes = [1, 8, 8], strides = [1, 1, 1]} : vector<8x8x8xf32> to vector<1x8x8xf32>
    %87 = vector.shape_cast %86 : vector<1x8x8xf32> to vector<8x8xf32>
    %88 = vector.extract_strided_slice %75 {offsets = [5, 0, 0], sizes = [1, 8, 8], strides = [1, 1, 1]} : vector<8x8x8xf32> to vector<1x8x8xf32>
    %89 = vector.shape_cast %88 : vector<1x8x8xf32> to vector<8x8xf32>
    %90 = tpu.concatenate %87, %89 in 0 : vector<8x8xf32>, vector<8x8xf32> -> vector<16x8xf32>
    %91 = vector.extract_strided_slice %75 {offsets = [6, 0, 0], sizes = [1, 8, 8], strides = [1, 1, 1]} : vector<8x8x8xf32> to vector<1x8x8xf32>
    %92 = vector.shape_cast %91 : vector<1x8x8xf32> to vector<8x8xf32>
    %93 = vector.extract_strided_slice %75 {offsets = [7, 0, 0], sizes = [1, 8, 8], strides = [1, 1, 1]} : vector<8x8x8xf32> to vector<1x8x8xf32>
    %94 = vector.shape_cast %93 : vector<1x8x8xf32> to vector<8x8xf32>
    %95 = tpu.concatenate %92, %94 in 0 : vector<8x8xf32>, vector<8x8xf32> -> vector<16x8xf32>
    %96 = tpu.concatenate %80, %85, %90, %95 in 1 : vector<16x8xf32>, vector<16x8xf32>, vector<16x8xf32>, vector<16x8xf32> -> vector<16x32xf32>
    %c0_13 = arith.constant 0 : index
    %c0_14 = arith.constant 0 : index
    %97 = vector.load %arg4[%c0_13, %c0_14] : memref<33x32xf32, #tpu.memory_space<vmem>>, vector<32x32xf32>
    %cst_15 = arith.constant dense<0.000000e+00> : vector<16x32xf32>
    %98 = tpu.matmul %96, %97, %cst_15 {dimension_numbers = #tpu.dot_dimension_numbers<[1], [0], [0], [1], [0, 0, 1, 1], [], []>} : vector<16x32xf32>, vector<32x32xf32>, vector<16x32xf32> -> vector<16x32xf32>
    %c32_16 = arith.constant 32 : index
    %c0_17 = arith.constant 0 : index
    %99 = vector.load %arg4[%c32_16, %c0_17] : memref<33x32xf32, #tpu.memory_space<vmem>>, vector<1x32xf32>
    %100 = vector.broadcast %99 : vector<1x32xf32> to vector<16x32xf32>
    %101 = arith.addf %98, %100 : vector<16x32xf32>
    %102 = arith.addf %0, %101 : vector<16x32xf32>
    %c0_18 = arith.constant 0 : index
    %c0_19 = arith.constant 0 : index
    %103 = vector.load %arg5[%c0_18, %c0_19] : memref<4x32xf32, #tpu.memory_space<vmem>>, vector<1x32xf32>
    %c1 = arith.constant 1 : index
    %c0_20 = arith.constant 0 : index
    %104 = vector.load %arg5[%c1, %c0_20] : memref<4x32xf32, #tpu.memory_space<vmem>>, vector<1x32xf32>
    %cst_21 = arith.constant dense<0.000000e+00> : vector<16xf32>
    %105 = vector.multi_reduction <add>, %102, %cst_21 [1] : vector<16x32xf32> to vector<16xf32>
    %106 = vector.shape_cast %105 : vector<16xf32> to vector<16x1xf32>
    %cst_22 = arith.constant 3.200000e+01 : f32
    %107 = vector.broadcast %cst_22 : f32 to vector<16x1xf32>
    %108 = arith.divf %106, %107 : vector<16x1xf32>
    %109 = vector.broadcast %108 : vector<16x1xf32> to vector<16x32xf32>
    %110 = arith.subf %102, %109 : vector<16x32xf32>
    %111 = arith.mulf %110, %110 : vector<16x32xf32>
    %cst_23 = arith.constant dense<0.000000e+00> : vector<16xf32>
    %112 = vector.multi_reduction <add>, %111, %cst_23 [1] : vector<16x32xf32> to vector<16xf32>
    %113 = vector.shape_cast %112 : vector<16xf32> to vector<16x1xf32>
    %cst_24 = arith.constant 3.200000e+01 : f32
    %114 = vector.broadcast %cst_24 : f32 to vector<16x1xf32>
    %115 = arith.divf %113, %114 : vector<16x1xf32>
    %116 = vector.broadcast %108 : vector<16x1xf32> to vector<16x32xf32>
    %117 = arith.subf %102, %116 : vector<16x32xf32>
    %cst_25 = arith.constant 9.99999997E-7 : f32
    %118 = vector.broadcast %cst_25 : f32 to vector<16x1xf32>
    %119 = arith.addf %115, %118 : vector<16x1xf32>
    %120 = math.rsqrt %119 : vector<16x1xf32>
    %121 = vector.broadcast %120 : vector<16x1xf32> to vector<16x32xf32>
    %122 = arith.mulf %117, %121 : vector<16x32xf32>
    %123 = vector.broadcast %103 : vector<1x32xf32> to vector<16x32xf32>
    %124 = arith.mulf %122, %123 : vector<16x32xf32>
    %125 = vector.broadcast %104 : vector<1x32xf32> to vector<16x32xf32>
    %126 = arith.addf %124, %125 : vector<16x32xf32>
    %c0_26 = arith.constant 0 : index
    %c0_27 = arith.constant 0 : index
    %127 = vector.load %arg6[%c0_26, %c0_27] : memref<33x128xf32, #tpu.memory_space<vmem>>, vector<32x128xf32>
    %cst_28 = arith.constant dense<0.000000e+00> : vector<16x128xf32>
    %128 = tpu.matmul %126, %127, %cst_28 {dimension_numbers = #tpu.dot_dimension_numbers<[1], [0], [0], [1], [0, 0, 1, 1], [], []>} : vector<16x32xf32>, vector<32x128xf32>, vector<16x128xf32> -> vector<16x128xf32>
    %c32_29 = arith.constant 32 : index
    %c0_30 = arith.constant 0 : index
    %129 = vector.load %arg6[%c32_29, %c0_30] : memref<33x128xf32, #tpu.memory_space<vmem>>, vector<1x128xf32>
    %130 = vector.broadcast %129 : vector<1x128xf32> to vector<16x128xf32>
    %131 = arith.addf %128, %130 : vector<16x128xf32>
    %132 = arith.mulf %131, %131 : vector<16x128xf32>
    %133 = arith.mulf %131, %132 : vector<16x128xf32>
    %cst_31 = arith.constant 4.471500e-02 : f32
    %134 = vector.broadcast %cst_31 : f32 to vector<16x128xf32>
    %135 = arith.mulf %134, %133 : vector<16x128xf32>
    %136 = arith.addf %131, %135 : vector<16x128xf32>
    %cst_32 = arith.constant 0.797884583 : f32
    %137 = vector.broadcast %cst_32 : f32 to vector<16x128xf32>
    %138 = arith.mulf %137, %136 : vector<16x128xf32>
    %139 = math.tanh %138 : vector<16x128xf32>
    %cst_33 = arith.constant 1.000000e+00 : f32
    %140 = vector.broadcast %cst_33 : f32 to vector<16x128xf32>
    %141 = arith.addf %140, %139 : vector<16x128xf32>
    %cst_34 = arith.constant 5.000000e-01 : f32
    %142 = vector.broadcast %cst_34 : f32 to vector<16x128xf32>
    %143 = arith.mulf %142, %141 : vector<16x128xf32>
    %144 = arith.mulf %131, %143 : vector<16x128xf32>
    %c0_35 = arith.constant 0 : index
    %c0_36 = arith.constant 0 : index
    %145 = vector.load %arg7[%c0_35, %c0_36] : memref<129x32xf32, #tpu.memory_space<vmem>>, vector<128x32xf32>
    %cst_37 = arith.constant dense<0.000000e+00> : vector<16x32xf32>
    %146 = tpu.matmul %144, %145, %cst_37 {dimension_numbers = #tpu.dot_dimension_numbers<[1], [0], [0], [1], [0, 0, 1, 1], [], []>} : vector<16x128xf32>, vector<128x32xf32>, vector<16x32xf32> -> vector<16x32xf32>
    %c128 = arith.constant 128 : index
    %c0_38 = arith.constant 0 : index
    %147 = vector.load %arg7[%c128, %c0_38] : memref<129x32xf32, #tpu.memory_space<vmem>>, vector<1x32xf32>
    %148 = vector.broadcast %147 : vector<1x32xf32> to vector<16x32xf32>
    %149 = arith.addf %146, %148 : vector<16x32xf32>
    %150 = arith.addf %126, %149 : vector<16x32xf32>
    %c2 = arith.constant 2 : index
    %c0_39 = arith.constant 0 : index
    %151 = vector.load %arg5[%c2, %c0_39] : memref<4x32xf32, #tpu.memory_space<vmem>>, vector<1x32xf32>
    %c3 = arith.constant 3 : index
    %c0_40 = arith.constant 0 : index
    %152 = vector.load %arg5[%c3, %c0_40] : memref<4x32xf32, #tpu.memory_space<vmem>>, vector<1x32xf32>
    %cst_41 = arith.constant dense<0.000000e+00> : vector<16xf32>
    %153 = vector.multi_reduction <add>, %150, %cst_41 [1] : vector<16x32xf32> to vector<16xf32>
    %154 = vector.shape_cast %153 : vector<16xf32> to vector<16x1xf32>
    %cst_42 = arith.constant 3.200000e+01 : f32
    %155 = vector.broadcast %cst_42 : f32 to vector<16x1xf32>
    %156 = arith.divf %154, %155 : vector<16x1xf32>
    %157 = vector.broadcast %156 : vector<16x1xf32> to vector<16x32xf32>
    %158 = arith.subf %150, %157 : vector<16x32xf32>
    %159 = arith.mulf %158, %158 : vector<16x32xf32>
    %cst_43 = arith.constant dense<0.000000e+00> : vector<16xf32>
    %160 = vector.multi_reduction <add>, %159, %cst_43 [1] : vector<16x32xf32> to vector<16xf32>
    %161 = vector.shape_cast %160 : vector<16xf32> to vector<16x1xf32>
    %cst_44 = arith.constant 3.200000e+01 : f32
    %162 = vector.broadcast %cst_44 : f32 to vector<16x1xf32>
    %163 = arith.divf %161, %162 : vector<16x1xf32>
    %164 = vector.broadcast %156 : vector<16x1xf32> to vector<16x32xf32>
    %165 = arith.subf %150, %164 : vector<16x32xf32>
    %cst_45 = arith.constant 9.99999997E-7 : f32
    %166 = vector.broadcast %cst_45 : f32 to vector<16x1xf32>
    %167 = arith.addf %163, %166 : vector<16x1xf32>
    %168 = math.rsqrt %167 : vector<16x1xf32>
    %169 = vector.broadcast %168 : vector<16x1xf32> to vector<16x32xf32>
    %170 = arith.mulf %165, %169 : vector<16x32xf32>
    %171 = vector.broadcast %151 : vector<1x32xf32> to vector<16x32xf32>
    %172 = arith.mulf %170, %171 : vector<16x32xf32>
    %173 = vector.broadcast %152 : vector<1x32xf32> to vector<16x32xf32>
    %174 = arith.addf %172, %173 : vector<16x32xf32>
    %c0_46 = arith.constant 0 : index
    %c0_47 = arith.constant 0 : index
    %175 = vector.load %arg8[%c0_46, %c0_47] : memref<33x128xf32, #tpu.memory_space<vmem>>, vector<32x128xf32>
    %cst_48 = arith.constant dense<0.000000e+00> : vector<16x128xf32>
    %176 = tpu.matmul %174, %175, %cst_48 {dimension_numbers = #tpu.dot_dimension_numbers<[1], [0], [0], [1], [0, 0, 1, 1], [], []>} : vector<16x32xf32>, vector<32x128xf32>, vector<16x128xf32> -> vector<16x128xf32>
    %c32_49 = arith.constant 32 : index
    %c0_50 = arith.constant 0 : index
    %177 = vector.load %arg8[%c32_49, %c0_50] : memref<33x128xf32, #tpu.memory_space<vmem>>, vector<1x128xf32>
    %178 = vector.broadcast %177 : vector<1x128xf32> to vector<16x128xf32>
    %179 = arith.addf %176, %178 : vector<16x128xf32>
    %cst_51 = arith.constant dense<0xFF800000> : vector<16xf32>
    %180 = vector.multi_reduction <maximumf>, %179, %cst_51 [1] : vector<16x128xf32> to vector<16xf32>
    %181 = vector.shape_cast %180 : vector<16xf32> to vector<16x1xf32>
    %182 = vector.broadcast %181 : vector<16x1xf32> to vector<16x128xf32>
    %183 = arith.subf %179, %182 : vector<16x128xf32>
    %184 = math.exp %183 : vector<16x128xf32>
    %cst_52 = arith.constant dense<0.000000e+00> : vector<16xf32>
    %185 = vector.multi_reduction <add>, %184, %cst_52 [1] : vector<16x128xf32> to vector<16xf32>
    %186 = vector.shape_cast %185 : vector<16xf32> to vector<16x1xf32>
    %187 = math.log %186 : vector<16x1xf32>
    %188 = vector.broadcast %187 : vector<16x1xf32> to vector<16x128xf32>
    %189 = arith.subf %183, %188 : vector<16x128xf32>
    %c0_53 = arith.constant 0 : index
    %c0_54 = arith.constant 0 : index
    %190 = vector.load %arg11[%c0_53, %c0_54] : memref<16x128xf32, #tpu.memory_space<vmem>>, vector<16x128xf32>
    tpu.vector_store %arg11[%c0_53, %c0_54], %189 {strides = array<i32>} : memref<16x128xf32, #tpu.memory_space<vmem>>, vector<16x128xf32>,
    %191 = vector.extract_strided_slice %174 {offsets = [0, 0], sizes = [1, 32], strides = [1, 1]} : vector<16x32xf32> to vector<1x32xf32>
    %192 = vector.extract_strided_slice %174 {offsets = [8, 0], sizes = [1, 32], strides = [1, 1]} : vector<16x32xf32> to vector<1x32xf32>
    %193 = tpu.concatenate %191, %192 in 0 : vector<1x32xf32>, vector<1x32xf32> -> vector<2x32xf32>
    %c0_55 = arith.constant 0 : index
    %c0_56 = arith.constant 0 : index
    %194 = vector.load %arg9[%c0_55, %c0_56] : memref<33x2xf32, #tpu.memory_space<vmem>>, vector<32x2xf32>
    %cst_57 = arith.constant dense<0.000000e+00> : vector<2x2xf32>
    %195 = tpu.matmul %193, %194, %cst_57 {dimension_numbers = #tpu.dot_dimension_numbers<[1], [0], [0], [1], [0, 0, 1, 1], [], []>} : vector<2x32xf32>, vector<32x2xf32>, vector<2x2xf32> -> vector<2x2xf32>
    %c32_58 = arith.constant 32 : index
    %c0_59 = arith.constant 0 : index
    %196 = vector.load %arg9[%c32_58, %c0_59] : memref<33x2xf32, #tpu.memory_space<vmem>>, vector<1x2xf32>
    %197 = vector.broadcast %196 : vector<1x2xf32> to vector<2x2xf32>
    %198 = arith.addf %195, %197 : vector<2x2xf32>
    %cst_60 = arith.constant dense<0xFF800000> : vector<2xf32>
    %199 = vector.multi_reduction <maximumf>, %198, %cst_60 [1] : vector<2x2xf32> to vector<2xf32>
    %200 = vector.shape_cast %199 : vector<2xf32> to vector<2x1xf32>
    %201 = vector.broadcast %200 : vector<2x1xf32> to vector<2x2xf32>
    %202 = arith.subf %198, %201 : vector<2x2xf32>
    %203 = math.exp %202 : vector<2x2xf32>
    %cst_61 = arith.constant dense<0.000000e+00> : vector<2xf32>
    %204 = vector.multi_reduction <add>, %203, %cst_61 [1] : vector<2x2xf32> to vector<2xf32>
    %205 = vector.shape_cast %204 : vector<2xf32> to vector<2x1xf32>
    %206 = math.log %205 : vector<2x1xf32>
    %207 = vector.broadcast %206 : vector<2x1xf32> to vector<2x2xf32>
    %208 = arith.subf %202, %207 : vector<2x2xf32>
    %c0_62 = arith.constant 0 : index
    %c0_63 = arith.constant 0 : index
    %209 = vector.load %arg10[%c0_62, %c0_63] : memref<2x2xf32, #tpu.memory_space<vmem>>, vector<2x2xf32>
    tpu.vector_store %arg10[%c0_62, %c0_63], %208 {strides = array<i32>} : memref<2x2xf32, #tpu.memory_space<vmem>>, vector<2x2xf32>,
    return
  }
  func.func @transform_0(%arg0: i32) -> (i32, i32) {
    %c0_i32 = arith.constant 0 : i32
    %c0_i32_0 = arith.constant 0 : i32
    %c0_i32_1 = arith.constant 0 : i32
    return %c0_i32, %c0_i32_0 : i32, i32
  }
  func.func @transform_1(%arg0: i32) -> (i32, i32, i32) {
    %c0_i32 = arith.constant 0 : i32
    %c0_i32_0 = arith.constant 0 : i32
    %c0_i32_1 = arith.constant 0 : i32
    %c0_i32_2 = arith.constant 0 : i32
    return %c0_i32, %c0_i32_0, %c0_i32_1 : i32, i32, i32
  }
  func.func @transform_2(%arg0: i32) -> (i32, i32) {
    %c0_i32 = arith.constant 0 : i32
    %c0_i32_0 = arith.constant 0 : i32
    %c0_i32_1 = arith.constant 0 : i32
    return %c0_i32, %c0_i32_0 : i32, i32
  }
  func.func @transform_3(%arg0: i32) -> (i32, i32) {
    %c0_i32 = arith.constant 0 : i32
    %c0_i32_0 = arith.constant 0 : i32
    %c0_i32_1 = arith.constant 0 : i32
    return %c0_i32, %c0_i32_0 : i32, i32
  }
  func.func @transform_4(%arg0: i32) -> (i32, i32) {
    %c0_i32 = arith.constant 0 : i32
    %c0_i32_0 = arith.constant 0 : i32
    %c0_i32_1 = arith.constant 0 : i32
    return %c0_i32, %c0_i32_0 : i32, i32
  }
  func.func @transform_5(%arg0: i32) -> (i32, i32) {
    %c0_i32 = arith.constant 0 : i32
    %c0_i32_0 = arith.constant 0 : i32
    %c0_i32_1 = arith.constant 0 : i32
    return %c0_i32, %c0_i32_0 : i32, i32
  }
  func.func @transform_6(%arg0: i32) -> (i32, i32) {
    %c0_i32 = arith.constant 0 : i32
    %c0_i32_0 = arith.constant 0 : i32
    %c0_i32_1 = arith.constant 0 : i32
    return %c0_i32, %c0_i32_0 : i32, i32
  }
  func.func @transform_7(%arg0: i32) -> (i32, i32) {
    %c0_i32 = arith.constant 0 : i32
    %c0_i32_0 = arith.constant 0 : i32
    %c0_i32_1 = arith.constant 0 : i32
    return %c0_i32, %c0_i32_0 : i32, i32
  }
  func.func @transform_8(%arg0: i32) -> (i32, i32) {
    %c0_i32 = arith.constant 0 : i32
    %c0_i32_0 = arith.constant 0 : i32
    %c0_i32_1 = arith.constant 0 : i32
    return %c0_i32, %c0_i32_0 : i32, i32
  }
  func.func @transform_9(%arg0: i32) -> (i32, i32) {
    %c0_i32 = arith.constant 0 : i32
    %c0_i32_0 = arith.constant 0 : i32
    %c0_i32_1 = arith.constant 0 : i32
    return %c0_i32, %c0_i32_0 : i32, i32
  }
  func.func @transform_10(%arg0: i32) -> (i32, i32) {
    %c0_i32 = arith.constant 0 : i32
    %c0_i32_0 = arith.constant 0 : i32
    %c0_i32_1 = arith.constant 0 : i32
    return %c0_i32, %c0_i32_0 : i32, i32
  }
}

</mosaic_0001>

<llo_original>
// kernel: bert_pretrain_forward.1
$region0: #{bert_pretrain_forward.1}
  #allocation0 [shape = 'u32[]', space=smem, size = 0x4, offset = 0x4, fixed_abs, tag = 'smem constant byte address 0x4 - core index']
  #allocation1 [shape = 'u32[144,128]{1,0:T(1,128)}', space=vmem, size = 0x12000, scoped, tag = 'internal scratch']
  %s0 = inlined_call_operand.vmem [shape: f32[16,32], index: 0, kind: input, shape index: {}]
  %s1 = inlined_call_operand.vmem [shape: f32[8,1,8], index: 1, kind: input, shape index: {}]
  %s2 = inlined_call_operand.vmem [shape: f32[33,96], index: 2, kind: input, shape index: {}]
  %s3 = inlined_call_operand.vmem [shape: f32[33,32], index: 3, kind: input, shape index: {}]
  %s4 = inlined_call_operand.vmem [shape: f32[4,32], index: 4, kind: input, shape index: {}]
  %s5 = inlined_call_operand.vmem [shape: f32[33,128], index: 5, kind: input, shape index: {}]
  %s6 = inlined_call_operand.vmem [shape: f32[129,32], index: 6, kind: input, shape index: {}]
  %s7 = inlined_call_operand.vmem [shape: f32[33,128], index: 7, kind: input, shape index: {}]
  %s8 = inlined_call_operand.vmem [shape: f32[33,2], index: 8, kind: input, shape index: {}]
  %s9 = inlined_call_operand.hbm [shape: f32[2,2], index: 9, kind: output, shape index: {0}]
  %s10 = inlined_call_operand.vmem [shape: f32[16,128], index: 10, kind: output, shape index: {1}]
  %11 = xla_tuple %s9, %s10
  %s12 = sld [smem:[#allocation0]]
  $region54: #{bert_pretrain_forward.1} parent=0
    _
  %s14 = ssub.s32 1, %s12
  %s15 = scalar_select 0, %s14, %s12
  $region1: #{bert_pretrain_forward.1} parent=0
    #allocation2 [shape = 'u8[1024]{0}', space=vmem, size = 0x400, scoped, tag = 'output window, operand 0, single buffered']
    #allocation3 [shape = 's32[1]{0}', space=sflag, size = 0x4, scoped, tag = 'scoped memory for bert_pretrain_forward.1']
    %16 = vsyncpa [#allocation3], 0
    // Predicated region
    $region2: #{bert_pretrain_forward.1} parent=1 // pred_check
      _
    $region3: #{bert_pretrain_forward.1} parent=1 // pred_check_branch
      %18 = sbr.rel (0) target = $region5
    $region4: #{bert_pretrain_forward.1} parent=1 // pred_region
      _
    $region5: #{bert_pretrain_forward.1} parent=1 // pred_fallthru
      _
    // Predicated region
    $region6: #{bert_pretrain_forward.1} parent=1 // pred_check
      _
    $region7: #{bert_pretrain_forward.1} parent=1 // pred_check_branch
      %20 = sbr.rel (0) target = $region9
    $region8: #{bert_pretrain_forward.1} parent=1 // pred_region
      _
    $region9: #{bert_pretrain_forward.1} parent=1 // pred_fallthru
      _
    // Predicated region
    $region10: #{bert_pretrain_forward.1} parent=1 // pred_check
      _
    $region11: #{bert_pretrain_forward.1} parent=1 // pred_check_branch
      %22 = sbr.rel (0) target = $region13
    $region12: #{bert_pretrain_forward.1} parent=1 // pred_region
      _
    $region13: #{bert_pretrain_forward.1} parent=1 // pred_fallthru
      _
    // Predicated region
    $region14: #{bert_pretrain_forward.1} parent=1 // pred_check
      _
    $region15: #{bert_pretrain_forward.1} parent=1 // pred_check_branch
      %24 = sbr.rel (0) target = $region17
    $region16: #{bert_pretrain_forward.1} parent=1 // pred_region
      _
    $region17: #{bert_pretrain_forward.1} parent=1 // pred_fallthru
      _
    // Predicated region
    $region18: #{bert_pretrain_forward.1} parent=1 // pred_check
      _
    $region19: #{bert_pretrain_forward.1} parent=1 // pred_check_branch
      %26 = sbr.rel (0) target = $region21
    $region20: #{bert_pretrain_forward.1} parent=1 // pred_region
      _
    $region21: #{bert_pretrain_forward.1} parent=1 // pred_fallthru
      _
    // Predicated region
    $region22: #{bert_pretrain_forward.1} parent=1 // pred_check
      _
    $region23: #{bert_pretrain_forward.1} parent=1 // pred_check_branch
      %28 = sbr.rel (0) target = $region25
    $region24: #{bert_pretrain_forward.1} parent=1 // pred_region
      _
    $region25: #{bert_pretrain_forward.1} parent=1 // pred_fallthru
      _
    // Predicated region
    $region26: #{bert_pretrain_forward.1} parent=1 // pred_check
      _
    $region27: #{bert_pretrain_forward.1} parent=1 // pred_check_branch
      %30 = sbr.rel (0) target = $region29
    $region28: #{bert_pretrain_forward.1} parent=1 // pred_region
      _
    $region29: #{bert_pretrain_forward.1} parent=1 // pred_fallthru
      _
    // Predicated region
    $region30: #{bert_pretrain_forward.1} parent=1 // pred_check
      _
    $region31: #{bert_pretrain_forward.1} parent=1 // pred_check_branch
      %32 = sbr.rel (0) target = $region33
    $region32: #{bert_pretrain_forward.1} parent=1 // pred_region
      _
    $region33: #{bert_pretrain_forward.1} parent=1 // pred_fallthru
      _
    // Predicated region
    $region34: #{bert_pretrain_forward.1} parent=1 // pred_check
      _
    $region35: #{bert_pretrain_forward.1} parent=1 // pred_check_branch
      %34 = sbr.rel (0) target = $region37
    $region36: #{bert_pretrain_forward.1} parent=1 // pred_region
      _
    $region37: #{bert_pretrain_forward.1} parent=1 // pred_fallthru
      _
    %v35 = vld [vmem:[%s0] sm:$0xff]
    %v36 = vld [vmem:[%s0 + $0x8] sm:$0xff]
    %v37 = vld [vmem:[%s2] sm:$0xff]
    %v38 = vld [vmem:[%s2 + $0x8] sm:$0xff]
    %v39 = vld [vmem:[%s2 + $0x10] sm:$0xff]
    %v40 = vld [vmem:[%s2 + $0x18] sm:$0xff]
    %v41 = vld [vmem:[%s2 + $0x20] sm:$0x1]
    %v42 = vlaneseq
    %v43 = vshrl.u32 %v42, 7
    %v44 = vsub.s32 0, %v43
    %v45 = vrot.slane %v41, %v44
    %vm46 = vcmask 261120
    %v48 = vsel %vm46, %v35, 0
    %v51 = vsel %vm46, %v36, 0
    %53 = vmatprep.subr.mxu0 0.0
    %54 = vmatpush1.msra.mxu0 %v37
    %55 = vmatprep.subr.mxu0 0.0
    %56 = vmatpush1.msra.mxu0 %v38
    %57 = vmatprep.subr.mxu0 0.0
    %58 = vmatpush1.msra.mxu0 %v39
    %59 = vmatprep.subr.mxu0 0.0
    %60 = vmatpush1.msra.mxu0 %v40
    %61 = vmatprep.subr.mxu0 0.0
    %62 = vmatpush1.msra.mxu0 0.0
    %63 = vmatprep.subr.mxu0 0.0
    %64 = vmatpush1.msra.mxu0 0.0
    %65 = vmatprep.subr.mxu0 0.0
    %66 = vmatpush1.msra.mxu0 0.0
    %67 = vmatprep.subr.mxu0 0.0
    %68 = vmatpush1.msra.mxu0 0.0
    %69 = vmatprep.subr.mxu0 0.0
    %70 = vmatpush1.msra.mxu0 0.0
    %71 = vmatprep.subr.mxu0 0.0
    %72 = vmatpush1.msra.mxu0 0.0
    %73 = vmatprep.subr.mxu0 0.0
    %74 = vmatpush1.msra.mxu0 0.0
    %75 = vmatprep.subr.mxu0 0.0
    %76 = vmatpush1.msra.mxu0 0.0
    %77 = vmatprep.subr.mxu0 0.0
    %78 = vmatpush1.msra.mxu0 0.0
    %79 = vmatprep.subr.mxu0 0.0
    %80 = vmatpush1.msra.mxu0 0.0
    %81 = vmatprep.subr.mxu0 0.0
    %82 = vmatpush1.msra.mxu0 0.0
    %83 = vmatprep.subr.mxu0 0.0
    %84 = vmatpush1.msra.mxu0 0.0
    %85 = vmatprep.subr.mxu0 0.0
    %86 = vmatpush1.msra.mxu0 0.0
    %87 = vmatprep.subr.mxu0 0.0
    %88 = vmatpush1.msra.mxu0 0.0
    %89 = vmatprep.subr.mxu0 0.0
    %90 = vmatpush1.msra.mxu0 0.0
    %91 = vmatprep.subr.mxu0 0.0
    %92 = vmatpush1.msra.mxu0 0.0
    %93 = vmatprep.subr.mxu0 0.0
    %94 = vmatpush1.msra.mxu0 0.0
    %95 = vmatprep.subr.mxu0 0.0
    %96 = vmatpush1.msra.mxu0 0.0
    %97 = vmatprep.subr.mxu0 0.0
    %98 = vmatpush1.msra.mxu0 0.0
    %99 = vmatprep.subr.mxu0 0.0
    %100 = vmatpush1.msra.mxu0 0.0
    %101 = vmatprep.subr.mxu0 0.0
    %102 = vmatpush1.msra.mxu0 0.0
    %103 = vmatprep.subr.mxu0 0.0
    %104 = vmatpush1.msra.mxu0 0.0
    %105 = vmatprep.subr.mxu0 0.0
    %106 = vmatpush1.msra.mxu0 0.0
    %107 = vmatprep.subr.mxu0 0.0
    %108 = vmatpush1.msra.mxu0 0.0
    %109 = vmatprep.subr.mxu0 0.0
    %110 = vmatpush1.msra.mxu0 0.0
    %111 = vmatprep.subr.mxu0 0.0
    %112 = vmatpush1.msra.mxu0 0.0
    %113 = vmatprep.subr.mxu0 0.0
    %114 = vmatpush1.msra.mxu0 0.0
    %115 = vmatprep.subr.mxu0 0.0
    %116 = vmatpush1.msra.mxu0 0.0
    %117 = vmatprep.mubr.f32.mxu0 0.0
    %118 = vmatmul.mubr.f32.gmra.mrb[0].mxu0 %v48
    %v119 = vpop.f32.mrb[0].mxu0
    %v120 = vadd.f32 %v45, %v119
    %v121 = vpop.f32.mrb[0].mxu0
    %122 = vmatprep.mubr.f32.mxu0 0.0
    %123 = vmatmul.mubr.f32.gmra.mrb[0].mxu0 %v51
    %v124 = vpop.f32.mrb[0].mxu0
    %v125 = vadd.f32 %v45, %v124
    %v126 = vpop.f32.mrb[0].mxu0
    %127 = vdwg.mxu0
    %129 = vrot.lane.b32.xlu0 %v120, 120
    %v130 = vpop.permute.xlu0 %129
    %132 = vrot.lane.b32.xlu0 %v125, 120
    %v133 = vpop.permute.xlu0 %132
    %134 = vrot.lane.b32.xlu0 %v120, 112
    %v135 = vpop.permute.xlu0 %134
    %136 = vrot.lane.b32.xlu0 %v125, 112
    %v137 = vpop.permute.xlu0 %136
    %138 = vrot.lane.b32.xlu0 %v120, 104
    %v139 = vpop.permute.xlu0 %138
    %140 = vrot.lane.b32.xlu0 %v125, 104
    %v141 = vpop.permute.xlu0 %140
    %142 = vrot.lane.b32.xlu0 %v120, 96
    %v143 = vpop.permute.xlu0 %142
    %vm144 = vcmask 64512
    %v145 = vsel %vm144, %v120, 0
    %v147 = vsel %vm144, %v143, 0
    %149 = vmatprep.subr.mxu0 0.0
    %150 = vmatpush1.xpose.msra.mxu0 %v147
    %151 = vmatprep.subr.mxu0 0.0
    %152 = vmatpush1.xpose.msra.mxu0 0.0
    %153 = vmatprep.subr.mxu0 0.0
    %154 = vmatpush1.xpose.msra.mxu0 0.0
    %155 = vmatprep.subr.mxu0 0.0
    %156 = vmatpush1.xpose.msra.mxu0 0.0
    %157 = vmatprep.subr.mxu0 0.0
    %158 = vmatpush1.xpose.msra.mxu0 0.0
    %159 = vmatprep.subr.mxu0 0.0
    %160 = vmatpush1.xpose.msra.mxu0 0.0
    %161 = vmatprep.subr.mxu0 0.0
    %162 = vmatpush1.xpose.msra.mxu0 0.0
    %163 = vmatprep.subr.mxu0 0.0
    %164 = vmatpush1.xpose.msra.mxu0 0.0
    %165 = vmatprep.subr.mxu0 0.0
    %166 = vmatpush1.xpose.msra.mxu0 0.0
    %167 = vmatprep.subr.mxu0 0.0
    %168 = vmatpush1.xpose.msra.mxu0 0.0
    %169 = vmatprep.subr.mxu0 0.0
    %170 = vmatpush1.xpose.msra.mxu0 0.0
    %171 = vmatprep.subr.mxu0 0.0
    %172 = vmatpush1.xpose.msra.mxu0 0.0
    %173 = vmatprep.subr.mxu0 0.0
    %174 = vmatpush1.xpose.msra.mxu0 0.0
    %175 = vmatprep.subr.mxu0 0.0
    %176 = vmatpush1.xpose.msra.mxu0 0.0
    %177 = vmatprep.subr.mxu0 0.0
    %178 = vmatpush1.xpose.msra.mxu0 0.0
    %179 = vmatprep.subr.mxu0 0.0
    %180 = vmatpush1.xpose.msra.mxu0 0.0
    %181 = vmatprep.subr.mxu0 0.0
    %182 = vmatpush1.xpose.msra.mxu0 0.0
    %183 = vmatprep.subr.mxu0 0.0
    %184 = vmatpush1.xpose.msra.mxu0 0.0
    %185 = vmatprep.subr.mxu0 0.0
    %186 = vmatpush1.xpose.msra.mxu0 0.0
    %187 = vmatprep.subr.mxu0 0.0
    %188 = vmatpush1.xpose.msra.mxu0 0.0
    %189 = vmatprep.subr.mxu0 0.0
    %190 = vmatpush1.xpose.msra.mxu0 0.0
    %191 = vmatprep.subr.mxu0 0.0
    %192 = vmatpush1.xpose.msra.mxu0 0.0
    %193 = vmatprep.subr.mxu0 0.0
    %194 = vmatpush1.xpose.msra.mxu0 0.0
    %195 = vmatprep.subr.mxu0 0.0
    %196 = vmatpush1.xpose.msra.mxu0 0.0
    %197 = vmatprep.subr.mxu0 0.0
    %198 = vmatpush1.xpose.msra.mxu0 0.0
    %199 = vmatprep.subr.mxu0 0.0
    %200 = vmatpush1.xpose.msra.mxu0 0.0
    %201 = vmatprep.subr.mxu0 0.0
    %202 = vmatpush1.xpose.msra.mxu0 0.0
    %203 = vmatprep.subr.mxu0 0.0
    %204 = vmatpush1.xpose.msra.mxu0 0.0
    %205 = vmatprep.subr.mxu0 0.0
    %206 = vmatpush1.xpose.msra.mxu0 0.0
    %207 = vmatprep.subr.mxu0 0.0
    %208 = vmatpush1.xpose.msra.mxu0 0.0
    %209 = vmatprep.subr.mxu0 0.0
    %210 = vmatpush1.xpose.msra.mxu0 0.0
    %211 = vmatprep.subr.mxu0 0.0
    %212 = vmatpush1.xpose.msra.mxu0 0.0
    %213 = vmatprep.mubr.f32.mxu0 0.0
    %214 = vmatmul.mubr.f32.gmra.mrb[0].mxu0 %v145
    %v215 = vpop.f32.mrb[0].mxu0
    %v216 = vadd.f32 0.0, %v215
    %v217 = vpop.f32.mrb[0].mxu0
    %218 = vdwg.mxu0
    %219 = vrot.lane.b32.xlu0 %v125, 96
    %v220 = vpop.permute.xlu0 %219
    %v221 = vsel %vm144, %v125, 0
    %v223 = vsel %vm144, %v220, 0
    %225 = vmatprep.subr.mxu0 0.0
    %226 = vmatpush1.xpose.msra.mxu0 %v223
    %227 = vmatprep.subr.mxu0 0.0
    %228 = vmatpush1.xpose.msra.mxu0 0.0
    %229 = vmatprep.subr.mxu0 0.0
    %230 = vmatpush1.xpose.msra.mxu0 0.0
    %231 = vmatprep.subr.mxu0 0.0
    %232 = vmatpush1.xpose.msra.mxu0 0.0
    %233 = vmatprep.subr.mxu0 0.0
    %234 = vmatpush1.xpose.msra.mxu0 0.0
    %235 = vmatprep.subr.mxu0 0.0
    %236 = vmatpush1.xpose.msra.mxu0 0.0
    %237 = vmatprep.subr.mxu0 0.0
    %238 = vmatpush1.xpose.msra.mxu0 0.0
    %239 = vmatprep.subr.mxu0 0.0
    %240 = vmatpush1.xpose.msra.mxu0 0.0
    %241 = vmatprep.subr.mxu0 0.0
    %242 = vmatpush1.xpose.msra.mxu0 0.0
    %243 = vmatprep.subr.mxu0 0.0
    %244 = vmatpush1.xpose.msra.mxu0 0.0
    %245 = vmatprep.subr.mxu0 0.0
    %246 = vmatpush1.xpose.msra.mxu0 0.0
    %247 = vmatprep.subr.mxu0 0.0
    %248 = vmatpush1.xpose.msra.mxu0 0.0
    %249 = vmatprep.subr.mxu0 0.0
    %250 = vmatpush1.xpose.msra.mxu0 0.0
    %251 = vmatprep.subr.mxu0 0.0
    %252 = vmatpush1.xpose.msra.mxu0 0.0
    %253 = vmatprep.subr.mxu0 0.0
    %254 = vmatpush1.xpose.msra.mxu0 0.0
    %255 = vmatprep.subr.mxu0 0.0
    %256 = vmatpush1.xpose.msra.mxu0 0.0
    %257 = vmatprep.subr.mxu0 0.0
    %258 = vmatpush1.xpose.msra.mxu0 0.0
    %259 = vmatprep.subr.mxu0 0.0
    %260 = vmatpush1.xpose.msra.mxu0 0.0
    %261 = vmatprep.subr.mxu0 0.0
    %262 = vmatpush1.xpose.msra.mxu0 0.0
    %263 = vmatprep.subr.mxu0 0.0
    %264 = vmatpush1.xpose.msra.mxu0 0.0
    %265 = vmatprep.subr.mxu0 0.0
    %266 = vmatpush1.xpose.msra.mxu0 0.0
    %267 = vmatprep.subr.mxu0 0.0
    %268 = vmatpush1.xpose.msra.mxu0 0.0
    %269 = vmatprep.subr.mxu0 0.0
    %270 = vmatpush1.xpose.msra.mxu0 0.0
    %271 = vmatprep.subr.mxu0 0.0
    %272 = vmatpush1.xpose.msra.mxu0 0.0
    %273 = vmatprep.subr.mxu0 0.0
    %274 = vmatpush1.xpose.msra.mxu0 0.0
    %275 = vmatprep.subr.mxu0 0.0
    %276 = vmatpush1.xpose.msra.mxu0 0.0
    %277 = vmatprep.subr.mxu0 0.0
    %278 = vmatpush1.xpose.msra.mxu0 0.0
    %279 = vmatprep.subr.mxu0 0.0
    %280 = vmatpush1.xpose.msra.mxu0 0.0
    %281 = vmatprep.subr.mxu0 0.0
    %282 = vmatpush1.xpose.msra.mxu0 0.0
    %283 = vmatprep.subr.mxu0 0.0
    %284 = vmatpush1.xpose.msra.mxu0 0.0
    %285 = vmatprep.subr.mxu0 0.0
    %286 = vmatpush1.xpose.msra.mxu0 0.0
    %287 = vmatprep.subr.mxu0 0.0
    %288 = vmatpush1.xpose.msra.mxu0 0.0
    %289 = vmatprep.mubr.f32.mxu0 0.0
    %290 = vmatmul.mubr.f32.gmra.mrb[0].mxu0 %v221
    %v291 = vpop.f32.mrb[0].mxu0
    %v292 = vadd.f32 0.0, %v291
    %v293 = vpop.f32.mrb[0].mxu0
    %294 = vdwg.mxu0
    %295 = vrot.lane.b32.xlu0 %v130, 96
    %v296 = vpop.permute.xlu0 %295
    %v297 = vsel %vm144, %v130, 0
    %v299 = vsel %vm144, %v296, 0
    %301 = vmatprep.subr.mxu0 0.0
    %302 = vmatpush1.xpose.msra.mxu0 %v299
    %303 = vmatprep.subr.mxu0 0.0
    %304 = vmatpush1.xpose.msra.mxu0 0.0
    %305 = vmatprep.subr.mxu0 0.0
    %306 = vmatpush1.xpose.msra.mxu0 0.0
    %307 = vmatprep.subr.mxu0 0.0
    %308 = vmatpush1.xpose.msra.mxu0 0.0
    %309 = vmatprep.subr.mxu0 0.0
    %310 = vmatpush1.xpose.msra.mxu0 0.0
    %311 = vmatprep.subr.mxu0 0.0
    %312 = vmatpush1.xpose.msra.mxu0 0.0
    %313 = vmatprep.subr.mxu0 0.0
    %314 = vmatpush1.xpose.msra.mxu0 0.0
    %315 = vmatprep.subr.mxu0 0.0
    %316 = vmatpush1.xpose.msra.mxu0 0.0
    %317 = vmatprep.subr.mxu0 0.0
    %318 = vmatpush1.xpose.msra.mxu0 0.0
    %319 = vmatprep.subr.mxu0 0.0
    %320 = vmatpush1.xpose.msra.mxu0 0.0
    %321 = vmatprep.subr.mxu0 0.0
    %322 = vmatpush1.xpose.msra.mxu0 0.0
    %323 = vmatprep.subr.mxu0 0.0
    %324 = vmatpush1.xpose.msra.mxu0 0.0
    %325 = vmatprep.subr.mxu0 0.0
    %326 = vmatpush1.xpose.msra.mxu0 0.0
    %327 = vmatprep.subr.mxu0 0.0
    %328 = vmatpush1.xpose.msra.mxu0 0.0
    %329 = vmatprep.subr.mxu0 0.0
    %330 = vmatpush1.xpose.msra.mxu0 0.0
    %331 = vmatprep.subr.mxu0 0.0
    %332 = vmatpush1.xpose.msra.mxu0 0.0
    %333 = vmatprep.subr.mxu0 0.0
    %334 = vmatpush1.xpose.msra.mxu0 0.0
    %335 = vmatprep.subr.mxu0 0.0
    %336 = vmatpush1.xpose.msra.mxu0 0.0
    %337 = vmatprep.subr.mxu0 0.0
    %338 = vmatpush1.xpose.msra.mxu0 0.0
    %339 = vmatprep.subr.mxu0 0.0
    %340 = vmatpush1.xpose.msra.mxu0 0.0
    %341 = vmatprep.subr.mxu0 0.0
    %342 = vmatpush1.xpose.msra.mxu0 0.0
    %343 = vmatprep.subr.mxu0 0.0
    %344 = vmatpush1.xpose.msra.mxu0 0.0
    %345 = vmatprep.subr.mxu0 0.0
    %346 = vmatpush1.xpose.msra.mxu0 0.0
    %347 = vmatprep.subr.mxu0 0.0
    %348 = vmatpush1.xpose.msra.mxu0 0.0
    %349 = vmatprep.subr.mxu0 0.0
    %350 = vmatpush1.xpose.msra.mxu0 0.0
    %351 = vmatprep.subr.mxu0 0.0
    %352 = vmatpush1.xpose.msra.mxu0 0.0
    %353 = vmatprep.subr.mxu0 0.0
    %354 = vmatpush1.xpose.msra.mxu0 0.0
    %355 = vmatprep.subr.mxu0 0.0
    %356 = vmatpush1.xpose.msra.mxu0 0.0
    %357 = vmatprep.subr.mxu0 0.0
    %358 = vmatpush1.xpose.msra.mxu0 0.0
    %359 = vmatprep.subr.mxu0 0.0
    %360 = vmatpush1.xpose.msra.mxu0 0.0
    %361 = vmatprep.subr.mxu0 0.0
    %362 = vmatpush1.xpose.msra.mxu0 0.0
    %363 = vmatprep.subr.mxu0 0.0
    %364 = vmatpush1.xpose.msra.mxu0 0.0
    %365 = vmatprep.mubr.f32.mxu0 0.0
    %366 = vmatmul.mubr.f32.gmra.mrb[0].mxu0 %v297
    %v367 = vpop.f32.mrb[0].mxu0
    %v368 = vadd.f32 0.0, %v367
    %v369 = vpop.f32.mrb[0].mxu0
    %370 = vdwg.mxu0
    %371 = vrot.lane.b32.xlu0 %v133, 96
    %v372 = vpop.permute.xlu0 %371
    %v373 = vsel %vm144, %v133, 0
    %v375 = vsel %vm144, %v372, 0
    %377 = vmatprep.subr.mxu0 0.0
    %378 = vmatpush1.xpose.msra.mxu0 %v375
    %379 = vmatprep.subr.mxu0 0.0
    %380 = vmatpush1.xpose.msra.mxu0 0.0
    %381 = vmatprep.subr.mxu0 0.0
    %382 = vmatpush1.xpose.msra.mxu0 0.0
    %383 = vmatprep.subr.mxu0 0.0
    %384 = vmatpush1.xpose.msra.mxu0 0.0
    %385 = vmatprep.subr.mxu0 0.0
    %386 = vmatpush1.xpose.msra.mxu0 0.0
    %387 = vmatprep.subr.mxu0 0.0
    %388 = vmatpush1.xpose.msra.mxu0 0.0
    %389 = vmatprep.subr.mxu0 0.0
    %390 = vmatpush1.xpose.msra.mxu0 0.0
    %391 = vmatprep.subr.mxu0 0.0
    %392 = vmatpush1.xpose.msra.mxu0 0.0
    %393 = vmatprep.subr.mxu0 0.0
    %394 = vmatpush1.xpose.msra.mxu0 0.0
    %395 = vmatprep.subr.mxu0 0.0
    %396 = vmatpush1.xpose.msra.mxu0 0.0
    %397 = vmatprep.subr.mxu0 0.0
    %398 = vmatpush1.xpose.msra.mxu0 0.0
    %399 = vmatprep.subr.mxu0 0.0
    %400 = vmatpush1.xpose.msra.mxu0 0.0
    %401 = vmatprep.subr.mxu0 0.0
    %402 = vmatpush1.xpose.msra.mxu0 0.0
    %403 = vmatprep.subr.mxu0 0.0
    %404 = vmatpush1.xpose.msra.mxu0 0.0
    %405 = vmatprep.subr.mxu0 0.0
    %406 = vmatpush1.xpose.msra.mxu0 0.0
    %407 = vmatprep.subr.mxu0 0.0
    %408 = vmatpush1.xpose.msra.mxu0 0.0
    %409 = vmatprep.subr.mxu0 0.0
    %410 = vmatpush1.xpose.msra.mxu0 0.0
    %411 = vmatprep.subr.mxu0 0.0
    %412 = vmatpush1.xpose.msra.mxu0 0.0
    %413 = vmatprep.subr.mxu0 0.0
    %414 = vmatpush1.xpose.msra.mxu0 0.0
    %415 = vmatprep.subr.mxu0 0.0
    %416 = vmatpush1.xpose.msra.mxu0 0.0
    %417 = vmatprep.subr.mxu0 0.0
    %418 = vmatpush1.xpose.msra.mxu0 0.0
    %419 = vmatprep.subr.mxu0 0.0
    %420 = vmatpush1.xpose.msra.mxu0 0.0
    %421 = vmatprep.subr.mxu0 0.0
    %422 = vmatpush1.xpose.msra.mxu0 0.0
    %423 = vmatprep.subr.mxu0 0.0
    %424 = vmatpush1.xpose.msra.mxu0 0.0
    %425 = vmatprep.subr.mxu0 0.0
    %426 = vmatpush1.xpose.msra.mxu0 0.0
    %427 = vmatprep.subr.mxu0 0.0
    %428 = vmatpush1.xpose.msra.mxu0 0.0
    %429 = vmatprep.subr.mxu0 0.0
    %430 = vmatpush1.xpose.msra.mxu0 0.0
    %431 = vmatprep.subr.mxu0 0.0
    %432 = vmatpush1.xpose.msra.mxu0 0.0
    %433 = vmatprep.subr.mxu0 0.0
    %434 = vmatpush1.xpose.msra.mxu0 0.0
    %435 = vmatprep.subr.mxu0 0.0
    %436 = vmatpush1.xpose.msra.mxu0 0.0
    %437 = vmatprep.subr.mxu0 0.0
    %438 = vmatpush1.xpose.msra.mxu0 0.0
    %439 = vmatprep.subr.mxu0 0.0
    %440 = vmatpush1.xpose.msra.mxu0 0.0
    %441 = vmatprep.mubr.f32.mxu0 0.0
    %442 = vmatmul.mubr.f32.gmra.mrb[0].mxu0 %v373
    %v443 = vpop.f32.mrb[0].mxu0
    %v444 = vadd.f32 0.0, %v443
    %v445 = vpop.f32.mrb[0].mxu0
    %446 = vdwg.mxu0
    %447 = vrot.lane.b32.xlu0 %v135, 96
    %v448 = vpop.permute.xlu0 %447
    %v449 = vsel %vm144, %v135, 0
    %v451 = vsel %vm144, %v448, 0
    %453 = vmatprep.subr.mxu0 0.0
    %454 = vmatpush1.xpose.msra.mxu0 %v451
    %455 = vmatprep.subr.mxu0 0.0
    %456 = vmatpush1.xpose.msra.mxu0 0.0
    %457 = vmatprep.subr.mxu0 0.0
    %458 = vmatpush1.xpose.msra.mxu0 0.0
    %459 = vmatprep.subr.mxu0 0.0
    %460 = vmatpush1.xpose.msra.mxu0 0.0
    %461 = vmatprep.subr.mxu0 0.0
    %462 = vmatpush1.xpose.msra.mxu0 0.0
    %463 = vmatprep.subr.mxu0 0.0
    %464 = vmatpush1.xpose.msra.mxu0 0.0
    %465 = vmatprep.subr.mxu0 0.0
    %466 = vmatpush1.xpose.msra.mxu0 0.0
    %467 = vmatprep.subr.mxu0 0.0
    %468 = vmatpush1.xpose.msra.mxu0 0.0
    %469 = vmatprep.subr.mxu0 0.0
    %470 = vmatpush1.xpose.msra.mxu0 0.0
    %471 = vmatprep.subr.mxu0 0.0
    %472 = vmatpush1.xpose.msra.mxu0 0.0
    %473 = vmatprep.subr.mxu0 0.0
    %474 = vmatpush1.xpose.msra.mxu0 0.0
    %475 = vmatprep.subr.mxu0 0.0
    %476 = vmatpush1.xpose.msra.mxu0 0.0
    %477 = vmatprep.subr.mxu0 0.0
    %478 = vmatpush1.xpose.msra.mxu0 0.0
    %479 = vmatprep.subr.mxu0 0.0
    %480 = vmatpush1.xpose.msra.mxu0 0.0
    %481 = vmatprep.subr.mxu0 0.0
    %482 = vmatpush1.xpose.msra.mxu0 0.0
    %483 = vmatprep.subr.mxu0 0.0
    %484 = vmatpush1.xpose.msra.mxu0 0.0
    %485 = vmatprep.subr.mxu0 0.0
    %486 = vmatpush1.xpose.msra.mxu0 0.0
    %487 = vmatprep.subr.mxu0 0.0
    %488 = vmatpush1.xpose.msra.mxu0 0.0
    %489 = vmatprep.subr.mxu0 0.0
    %490 = vmatpush1.xpose.msra.mxu0 0.0
    %491 = vmatprep.subr.mxu0 0.0
    %492 = vmatpush1.xpose.msra.mxu0 0.0
    %493 = vmatprep.subr.mxu0 0.0
    %494 = vmatpush1.xpose.msra.mxu0 0.0
    %495 = vmatprep.subr.mxu0 0.0
    %496 = vmatpush1.xpose.msra.mxu0 0.0
    %497 = vmatprep.subr.mxu0 0.0
    %498 = vmatpush1.xpose.msra.mxu0 0.0
    %499 = vmatprep.subr.mxu0 0.0
    %500 = vmatpush1.xpose.msra.mxu0 0.0
    %501 = vmatprep.subr.mxu0 0.0
    %502 = vmatpush1.xpose.msra.mxu0 0.0
    %503 = vmatprep.subr.mxu0 0.0
    %504 = vmatpush1.xpose.msra.mxu0 0.0
    %505 = vmatprep.subr.mxu0 0.0
    %506 = vmatpush1.xpose.msra.mxu0 0.0
    %507 = vmatprep.subr.mxu0 0.0
    %508 = vmatpush1.xpose.msra.mxu0 0.0
    %509 = vmatprep.subr.mxu0 0.0
    %510 = vmatpush1.xpose.msra.mxu0 0.0
    %511 = vmatprep.subr.mxu0 0.0
    %512 = vmatpush1.xpose.msra.mxu0 0.0
    %513 = vmatprep.subr.mxu0 0.0
    %514 = vmatpush1.xpose.msra.mxu0 0.0
    %515 = vmatprep.subr.mxu0 0.0
    %516 = vmatpush1.xpose.msra.mxu0 0.0
    %517 = vmatprep.mubr.f32.mxu0 0.0
    %518 = vmatmul.mubr.f32.gmra.mrb[0].mxu0 %v449
    %v519 = vpop.f32.mrb[0].mxu0
    %v520 = vadd.f32 0.0, %v519
    %v521 = vpop.f32.mrb[0].mxu0
    %522 = vdwg.mxu0
    %523 = vrot.lane.b32.xlu0 %v137, 96
    %v524 = vpop.permute.xlu0 %523
    %v525 = vsel %vm144, %v137, 0
    %v527 = vsel %vm144, %v524, 0
    %529 = vmatprep.subr.mxu0 0.0
    %530 = vmatpush1.xpose.msra.mxu0 %v527
    %531 = vmatprep.subr.mxu0 0.0
    %532 = vmatpush1.xpose.msra.mxu0 0.0
    %533 = vmatprep.subr.mxu0 0.0
    %534 = vmatpush1.xpose.msra.mxu0 0.0
    %535 = vmatprep.subr.mxu0 0.0
    %536 = vmatpush1.xpose.msra.mxu0 0.0
    %537 = vmatprep.subr.mxu0 0.0
    %538 = vmatpush1.xpose.msra.mxu0 0.0
    %539 = vmatprep.subr.mxu0 0.0
    %540 = vmatpush1.xpose.msra.mxu0 0.0
    %541 = vmatprep.subr.mxu0 0.0
    %542 = vmatpush1.xpose.msra.mxu0 0.0
    %543 = vmatprep.subr.mxu0 0.0
    %544 = vmatpush1.xpose.msra.mxu0 0.0
    %545 = vmatprep.subr.mxu0 0.0
    %546 = vmatpush1.xpose.msra.mxu0 0.0
    %547 = vmatprep.subr.mxu0 0.0
    %548 = vmatpush1.xpose.msra.mxu0 0.0
    %549 = vmatprep.subr.mxu0 0.0
    %550 = vmatpush1.xpose.msra.mxu0 0.0
    %551 = vmatprep.subr.mxu0 0.0
    %552 = vmatpush1.xpose.msra.mxu0 0.0
    %553 = vmatprep.subr.mxu0 0.0
    %554 = vmatpush1.xpose.msra.mxu0 0.0
    %555 = vmatprep.subr.mxu0 0.0
    %556 = vmatpush1.xpose.msra.mxu0 0.0
    %557 = vmatprep.subr.mxu0 0.0
    %558 = vmatpush1.xpose.msra.mxu0 0.0
    %559 = vmatprep.subr.mxu0 0.0
    %560 = vmatpush1.xpose.msra.mxu0 0.0
    %561 = vmatprep.subr.mxu0 0.0
    %562 = vmatpush1.xpose.msra.mxu0 0.0
    %563 = vmatprep.subr.mxu0 0.0
    %564 = vmatpush1.xpose.msra.mxu0 0.0
    %565 = vmatprep.subr.mxu0 0.0
    %566 = vmatpush1.xpose.msra.mxu0 0.0
    %567 = vmatprep.subr.mxu0 0.0
    %568 = vmatpush1.xpose.msra.mxu0 0.0
    %569 = vmatprep.subr.mxu0 0.0
    %570 = vmatpush1.xpose.msra.mxu0 0.0
    %571 = vmatprep.subr.mxu0 0.0
    %572 = vmatpush1.xpose.msra.mxu0 0.0
    %573 = vmatprep.subr.mxu0 0.0
    %574 = vmatpush1.xpose.msra.mxu0 0.0
    %575 = vmatprep.subr.mxu0 0.0
    %576 = vmatpush1.xpose.msra.mxu0 0.0
    %577 = vmatprep.subr.mxu0 0.0
    %578 = vmatpush1.xpose.msra.mxu0 0.0
    %579 = vmatprep.subr.mxu0 0.0
    %580 = vmatpush1.xpose.msra.mxu0 0.0
    %581 = vmatprep.subr.mxu0 0.0
    %582 = vmatpush1.xpose.msra.mxu0 0.0
    %583 = vmatprep.subr.mxu0 0.0
    %584 = vmatpush1.xpose.msra.mxu0 0.0
    %585 = vmatprep.subr.mxu0 0.0
    %586 = vmatpush1.xpose.msra.mxu0 0.0
    %587 = vmatprep.subr.mxu0 0.0
    %588 = vmatpush1.xpose.msra.mxu0 0.0
    %589 = vmatprep.subr.mxu0 0.0
    %590 = vmatpush1.xpose.msra.mxu0 0.0
    %591 = vmatprep.subr.mxu0 0.0
    %592 = vmatpush1.xpose.msra.mxu0 0.0
    %593 = vmatprep.mubr.f32.mxu0 0.0
    %594 = vmatmul.mubr.f32.gmra.mrb[0].mxu0 %v525
    %v595 = vpop.f32.mrb[0].mxu0
    %v596 = vadd.f32 0.0, %v595
    %v597 = vpop.f32.mrb[0].mxu0
    %598 = vdwg.mxu0
    %599 = vrot.lane.b32.xlu0 %v139, 96
    %v600 = vpop.permute.xlu0 %599
    %v601 = vsel %vm144, %v139, 0
    %v603 = vsel %vm144, %v600, 0
    %605 = vmatprep.subr.mxu0 0.0
    %606 = vmatpush1.xpose.msra.mxu0 %v603
    %607 = vmatprep.subr.mxu0 0.0
    %608 = vmatpush1.xpose.msra.mxu0 0.0
    %609 = vmatprep.subr.mxu0 0.0
    %610 = vmatpush1.xpose.msra.mxu0 0.0
    %611 = vmatprep.subr.mxu0 0.0
    %612 = vmatpush1.xpose.msra.mxu0 0.0
    %613 = vmatprep.subr.mxu0 0.0
    %614 = vmatpush1.xpose.msra.mxu0 0.0
    %615 = vmatprep.subr.mxu0 0.0
    %616 = vmatpush1.xpose.msra.mxu0 0.0
    %617 = vmatprep.subr.mxu0 0.0
    %618 = vmatpush1.xpose.msra.mxu0 0.0
    %619 = vmatprep.subr.mxu0 0.0
    %620 = vmatpush1.xpose.msra.mxu0 0.0
    %621 = vmatprep.subr.mxu0 0.0
    %622 = vmatpush1.xpose.msra.mxu0 0.0
    %623 = vmatprep.subr.mxu0 0.0
    %624 = vmatpush1.xpose.msra.mxu0 0.0
    %625 = vmatprep.subr.mxu0 0.0
    %626 = vmatpush1.xpose.msra.mxu0 0.0
    %627 = vmatprep.subr.mxu0 0.0
    %628 = vmatpush1.xpose.msra.mxu0 0.0
    %629 = vmatprep.subr.mxu0 0.0
    %630 = vmatpush1.xpose.msra.mxu0 0.0
    %631 = vmatprep.subr.mxu0 0.0
    %632 = vmatpush1.xpose.msra.mxu0 0.0
    %633 = vmatprep.subr.mxu0 0.0
    %634 = vmatpush1.xpose.msra.mxu0 0.0
    %635 = vmatprep.subr.mxu0 0.0
    %636 = vmatpush1.xpose.msra.mxu0 0.0
    %637 = vmatprep.subr.mxu0 0.0
    %638 = vmatpush1.xpose.msra.mxu0 0.0
    %639 = vmatprep.subr.mxu0 0.0
    %640 = vmatpush1.xpose.msra.mxu0 0.0
    %641 = vmatprep.subr.mxu0 0.0
    %642 = vmatpush1.xpose.msra.mxu0 0.0
    %643 = vmatprep.subr.mxu0 0.0
    %644 = vmatpush1.xpose.msra.mxu0 0.0
    %645 = vmatprep.subr.mxu0 0.0
    %646 = vmatpush1.xpose.msra.mxu0 0.0
    %647 = vmatprep.subr.mxu0 0.0
    %648 = vmatpush1.xpose.msra.mxu0 0.0
    %649 = vmatprep.subr.mxu0 0.0
    %650 = vmatpush1.xpose.msra.mxu0 0.0
    %651 = vmatprep.subr.mxu0 0.0
    %652 = vmatpush1.xpose.msra.mxu0 0.0
    %653 = vmatprep.subr.mxu0 0.0
    %654 = vmatpush1.xpose.msra.mxu0 0.0
    %655 = vmatprep.subr.mxu0 0.0
    %656 = vmatpush1.xpose.msra.mxu0 0.0
    %657 = vmatprep.subr.mxu0 0.0
    %658 = vmatpush1.xpose.msra.mxu0 0.0
    %659 = vmatprep.subr.mxu0 0.0
    %660 = vmatpush1.xpose.msra.mxu0 0.0
    %661 = vmatprep.subr.mxu0 0.0
    %662 = vmatpush1.xpose.msra.mxu0 0.0
    %663 = vmatprep.subr.mxu0 0.0
    %664 = vmatpush1.xpose.msra.mxu0 0.0
    %665 = vmatprep.subr.mxu0 0.0
    %666 = vmatpush1.xpose.msra.mxu0 0.0
    %667 = vmatprep.subr.mxu0 0.0
    %668 = vmatpush1.xpose.msra.mxu0 0.0
    %669 = vmatprep.mubr.f32.mxu0 0.0
    %670 = vmatmul.mubr.f32.gmra.mrb[0].mxu0 %v601
    %v671 = vpop.f32.mrb[0].mxu0
    %v672 = vadd.f32 0.0, %v671
    %v673 = vpop.f32.mrb[0].mxu0
    %674 = vdwg.mxu0
    %675 = vrot.lane.b32.xlu0 %v141, 96
    %v676 = vpop.permute.xlu0 %675
    %v677 = vsel %vm144, %v141, 0
    %v679 = vsel %vm144, %v676, 0
    %681 = vmatprep.subr.mxu0 0.0
    %682 = vmatpush1.xpose.msra.mxu0 %v679
    %683 = vmatprep.subr.mxu0 0.0
    %684 = vmatpush1.xpose.msra.mxu0 0.0
    %685 = vmatprep.subr.mxu0 0.0
    %686 = vmatpush1.xpose.msra.mxu0 0.0
    %687 = vmatprep.subr.mxu0 0.0
    %688 = vmatpush1.xpose.msra.mxu0 0.0
    %689 = vmatprep.subr.mxu0 0.0
    %690 = vmatpush1.xpose.msra.mxu0 0.0
    %691 = vmatprep.subr.mxu0 0.0
    %692 = vmatpush1.xpose.msra.mxu0 0.0
    %693 = vmatprep.subr.mxu0 0.0
    %694 = vmatpush1.xpose.msra.mxu0 0.0
    %695 = vmatprep.subr.mxu0 0.0
    %696 = vmatpush1.xpose.msra.mxu0 0.0
    %697 = vmatprep.subr.mxu0 0.0
    %698 = vmatpush1.xpose.msra.mxu0 0.0
    %699 = vmatprep.subr.mxu0 0.0
    %700 = vmatpush1.xpose.msra.mxu0 0.0
    %701 = vmatprep.subr.mxu0 0.0
    %702 = vmatpush1.xpose.msra.mxu0 0.0
    %703 = vmatprep.subr.mxu0 0.0
    %704 = vmatpush1.xpose.msra.mxu0 0.0
    %705 = vmatprep.subr.mxu0 0.0
    %706 = vmatpush1.xpose.msra.mxu0 0.0
    %707 = vmatprep.subr.mxu0 0.0
    %708 = vmatpush1.xpose.msra.mxu0 0.0
    %709 = vmatprep.subr.mxu0 0.0
    %710 = vmatpush1.xpose.msra.mxu0 0.0
    %711 = vmatprep.subr.mxu0 0.0
    %712 = vmatpush1.xpose.msra.mxu0 0.0
    %713 = vmatprep.subr.mxu0 0.0
    %714 = vmatpush1.xpose.msra.mxu0 0.0
    %715 = vmatprep.subr.mxu0 0.0
    %716 = vmatpush1.xpose.msra.mxu0 0.0
    %717 = vmatprep.subr.mxu0 0.0
    %718 = vmatpush1.xpose.msra.mxu0 0.0
    %719 = vmatprep.subr.mxu0 0.0
    %720 = vmatpush1.xpose.msra.mxu0 0.0
    %721 = vmatprep.subr.mxu0 0.0
    %722 = vmatpush1.xpose.msra.mxu0 0.0
    %723 = vmatprep.subr.mxu0 0.0
    %724 = vmatpush1.xpose.msra.mxu0 0.0
    %725 = vmatprep.subr.mxu0 0.0
    %726 = vmatpush1.xpose.msra.mxu0 0.0
    %727 = vmatprep.subr.mxu0 0.0
    %728 = vmatpush1.xpose.msra.mxu0 0.0
    %729 = vmatprep.subr.mxu0 0.0
    %730 = vmatpush1.xpose.msra.mxu0 0.0
    %731 = vmatprep.subr.mxu0 0.0
    %732 = vmatpush1.xpose.msra.mxu0 0.0
    %733 = vmatprep.subr.mxu0 0.0
    %734 = vmatpush1.xpose.msra.mxu0 0.0
    %735 = vmatprep.subr.mxu0 0.0
    %736 = vmatpush1.xpose.msra.mxu0 0.0
    %737 = vmatprep.subr.mxu0 0.0
    %738 = vmatpush1.xpose.msra.mxu0 0.0
    %739 = vmatprep.subr.mxu0 0.0
    %740 = vmatpush1.xpose.msra.mxu0 0.0
    %741 = vmatprep.subr.mxu0 0.0
    %742 = vmatpush1.xpose.msra.mxu0 0.0
    %743 = vmatprep.subr.mxu0 0.0
    %744 = vmatpush1.xpose.msra.mxu0 0.0
    %745 = vmatprep.mubr.f32.mxu0 0.0
    %746 = vmatmul.mubr.f32.gmra.mrb[0].mxu0 %v677
    %v747 = vpop.f32.mrb[0].mxu0
    %v748 = vadd.f32 0.0, %v747
    %v749 = vpop.f32.mrb[0].mxu0
    %750 = vdwg.mxu0
    %v751 = vmul.f32 %v216, 0.35355338
    %v752 = vmul.f32 %v292, 0.35355338
    %v753 = vmul.f32 %v368, 0.35355338
    %v754 = vmul.f32 %v444, 0.35355338
    %v755 = vmul.f32 %v520, 0.35355338
    %v756 = vmul.f32 %v596, 0.35355338
    %v757 = vmul.f32 %v672, 0.35355338
    %v758 = vmul.f32 %v748, 0.35355338
    %v759 = vld [vmem:[%s1] sm:$0x1]
    %v760 = vld [vmem:[%s1 + $0x1] sm:$0x1]
    %v761 = vld [vmem:[%s1 + $0x2] sm:$0x1]
    %v762 = vld [vmem:[%s1 + $0x3] sm:$0x1]
    %v763 = vld [vmem:[%s1 + $0x4] sm:$0x1]
    %v764 = vld [vmem:[%s1 + $0x5] sm:$0x1]
    %v765 = vld [vmem:[%s1 + $0x6] sm:$0x1]
    %v766 = vld [vmem:[%s1 + $0x7] sm:$0x1]
    %v775 = vlaneseq
    %v776 = vshrl.u32 %v775, 7
    %v777 = vsub.s32 0, %v776
    %v778 = vrot.slane %v759, %v777
    %v779 = vlaneseq
    %v780 = vshrl.u32 %v779, 7
    %v781 = vsub.s32 0, %v780
    %v782 = vrot.slane %v760, %v781
    %v783 = vlaneseq
    %v784 = vshrl.u32 %v783, 7
    %v785 = vsub.s32 0, %v784
    %v786 = vrot.slane %v761, %v785
    %v787 = vlaneseq
    %v788 = vshrl.u32 %v787, 7
    %v789 = vsub.s32 0, %v788
    %v790 = vrot.slane %v762, %v789
    %v791 = vlaneseq
    %v792 = vshrl.u32 %v791, 7
    %v793 = vsub.s32 0, %v792
    %v794 = vrot.slane %v763, %v793
    %v795 = vlaneseq
    %v796 = vshrl.u32 %v795, 7
    %v797 = vsub.s32 0, %v796
    %v798 = vrot.slane %v764, %v797
    %v799 = vlaneseq
    %v800 = vshrl.u32 %v799, 7
    %v801 = vsub.s32 0, %v800
    %v802 = vrot.slane %v765, %v801
    %v803 = vlaneseq
    %v804 = vshrl.u32 %v803, 7
    %v805 = vsub.s32 0, %v804
    %v806 = vrot.slane %v766, %v805
    %v815 = vadd.f32 %v751, %v778
    %v816 = vadd.f32 %v752, %v782
    %v817 = vadd.f32 %v753, %v786
    %v818 = vadd.f32 %v754, %v790
    %v819 = vadd.f32 %v755, %v794
    %v820 = vadd.f32 %v756, %v798
    %v821 = vadd.f32 %v757, %v802
    %v822 = vadd.f32 %v758, %v806
    %v823 = vsel %vm144, %v815, -inf
    %824 = vmax.xlane.f32.xlu0 %v823
    %v825 = vpop.xlane.xlu0 %824
    %v826 = vsel %vm144, %v816, -inf
    %827 = vmax.xlane.f32.xlu0 %v826
    %v828 = vpop.xlane.xlu0 %827
    %v829 = vsel %vm144, %v817, -inf
    %830 = vmax.xlane.f32.xlu0 %v829
    %v831 = vpop.xlane.xlu0 %830
    %v832 = vsel %vm144, %v818, -inf
    %833 = vmax.xlane.f32.xlu0 %v832
    %v834 = vpop.xlane.xlu0 %833
    %v835 = vsel %vm144, %v819, -inf
    %836 = vmax.xlane.f32.xlu0 %v835
    %v837 = vpop.xlane.xlu0 %836
    %v838 = vsel %vm144, %v820, -inf
    %839 = vmax.xlane.f32.xlu0 %v838
    %v840 = vpop.xlane.xlu0 %839
    %v841 = vsel %vm144, %v821, -inf
    %842 = vmax.xlane.f32.xlu0 %v841
    %v843 = vpop.xlane.xlu0 %842
    %v844 = vsel %vm144, %v822, -inf
    %845 = vmax.xlane.f32.xlu0 %v844
    %v846 = vpop.xlane.xlu0 %845
    %v847 = vsub.f32 %v815, %v825
    %v848 = vsub.f32 %v816, %v828
    %v849 = vsub.f32 %v817, %v831
    %v850 = vsub.f32 %v818, %v834
    %v851 = vsub.f32 %v819, %v837
    %v852 = vsub.f32 %v820, %v840
    %v853 = vsub.f32 %v821, %v843
    %v854 = vsub.f32 %v822, %v846
    %v855 = vmul.f32 %v847, 1.442695
    %v856 = vpow.pop %v855
    %v857 = vmul.f32 %v848, 1.442695
    %v858 = vpow.pop %v857
    %v859 = vmul.f32 %v849, 1.442695
    %v860 = vpow.pop %v859
    %v861 = vmul.f32 %v850, 1.442695
    %v862 = vpow.pop %v861
    %v863 = vmul.f32 %v851, 1.442695
    %v864 = vpow.pop %v863
    %v865 = vmul.f32 %v852, 1.442695
    %v866 = vpow.pop %v865
    %v867 = vmul.f32 %v853, 1.442695
    %v868 = vpow.pop %v867
    %v869 = vmul.f32 %v854, 1.442695
    %v870 = vpow.pop %v869
    %v871 = vsel %vm144, %v856, 0.0
    %872 = vadd.xlane.f32.xlu0 %v871
    %v873 = vpop.xlane.xlu0 %872
    %v874 = vsel %vm144, %v858, 0.0
    %875 = vadd.xlane.f32.xlu0 %v874
    %v876 = vpop.xlane.xlu0 %875
    %v877 = vsel %vm144, %v860, 0.0
    %878 = vadd.xlane.f32.xlu0 %v877
    %v879 = vpop.xlane.xlu0 %878
    %v880 = vsel %vm144, %v862, 0.0
    %881 = vadd.xlane.f32.xlu0 %v880
    %v882 = vpop.xlane.xlu0 %881
    %v883 = vsel %vm144, %v864, 0.0
    %884 = vadd.xlane.f32.xlu0 %v883
    %v885 = vpop.xlane.xlu0 %884
    %v886 = vsel %vm144, %v866, 0.0
    %887 = vadd.xlane.f32.xlu0 %v886
    %v888 = vpop.xlane.xlu0 %887
    %v889 = vsel %vm144, %v868, 0.0
    %890 = vadd.xlane.f32.xlu0 %v889
    %v891 = vpop.xlane.xlu0 %890
    %v892 = vsel %vm144, %v870, 0.0
    %893 = vadd.xlane.f32.xlu0 %v892
    %v894 = vpop.xlane.xlu0 %893
    %v895 = vrcp.pop %v873
    %v896 = vrcp.pop %v876
    %v897 = vrcp.pop %v879
    %v898 = vrcp.pop %v882
    %v899 = vrcp.pop %v885
    %v900 = vrcp.pop %v888
    %v901 = vrcp.pop %v891
    %v902 = vrcp.pop %v894
    %v903 = vmul.f32 %v856, %v895
    %v904 = vmul.f32 %v858, %v896
    %v905 = vmul.f32 %v860, %v897
    %v906 = vmul.f32 %v862, %v898
    %v907 = vmul.f32 %v864, %v899
    %v908 = vmul.f32 %v866, %v900
    %v909 = vmul.f32 %v868, %v901
    %v910 = vmul.f32 %v870, %v902
    %911 = vrot.lane.b32.xlu0 %v120, 64
    %v912 = vpop.permute.xlu0 %911
    %v915 = vsel %vm144, %v903, 0
    %917 = vmatprep.subr.mxu0 0.0
    %918 = vmatpush1.msra.mxu0 %v912
    %919 = vmatprep.subr.mxu0 0.0
    %920 = vmatpush1.msra.mxu0 0.0
    %921 = vmatprep.subr.mxu0 0.0
    %922 = vmatpush1.msra.mxu0 0.0
    %923 = vmatprep.subr.mxu0 0.0
    %924 = vmatpush1.msra.mxu0 0.0
    %925 = vmatprep.subr.mxu0 0.0
    %926 = vmatpush1.msra.mxu0 0.0
    %927 = vmatprep.subr.mxu0 0.0
    %928 = vmatpush1.msra.mxu0 0.0
    %929 = vmatprep.subr.mxu0 0.0
    %930 = vmatpush1.msra.mxu0 0.0
    %931 = vmatprep.subr.mxu0 0.0
    %932 = vmatpush1.msra.mxu0 0.0
    %933 = vmatprep.subr.mxu0 0.0
    %934 = vmatpush1.msra.mxu0 0.0
    %935 = vmatprep.subr.mxu0 0.0
    %936 = vmatpush1.msra.mxu0 0.0
    %937 = vmatprep.subr.mxu0 0.0
    %938 = vmatpush1.msra.mxu0 0.0
    %939 = vmatprep.subr.mxu0 0.0
    %940 = vmatpush1.msra.mxu0 0.0
    %941 = vmatprep.subr.mxu0 0.0
    %942 = vmatpush1.msra.mxu0 0.0
    %943 = vmatprep.subr.mxu0 0.0
    %944 = vmatpush1.msra.mxu0 0.0
    %945 = vmatprep.subr.mxu0 0.0
    %946 = vmatpush1.msra.mxu0 0.0
    %947 = vmatprep.subr.mxu0 0.0
    %948 = vmatpush1.msra.mxu0 0.0
    %949 = vmatprep.subr.mxu0 0.0
    %950 = vmatpush1.msra.mxu0 0.0
    %951 = vmatprep.subr.mxu0 0.0
    %952 = vmatpush1.msra.mxu0 0.0
    %953 = vmatprep.subr.mxu0 0.0
    %954 = vmatpush1.msra.mxu0 0.0
    %955 = vmatprep.subr.mxu0 0.0
    %956 = vmatpush1.msra.mxu0 0.0
    %957 = vmatprep.subr.mxu0 0.0
    %958 = vmatpush1.msra.mxu0 0.0
    %959 = vmatprep.subr.mxu0 0.0
    %960 = vmatpush1.msra.mxu0 0.0
    %961 = vmatprep.subr.mxu0 0.0
    %962 = vmatpush1.msra.mxu0 0.0
    %963 = vmatprep.subr.mxu0 0.0
    %964 = vmatpush1.msra.mxu0 0.0
    %965 = vmatprep.subr.mxu0 0.0
    %966 = vmatpush1.msra.mxu0 0.0
    %967 = vmatprep.subr.mxu0 0.0
    %968 = vmatpush1.msra.mxu0 0.0
    %969 = vmatprep.subr.mxu0 0.0
    %970 = vmatpush1.msra.mxu0 0.0
    %971 = vmatprep.subr.mxu0 0.0
    %972 = vmatpush1.msra.mxu0 0.0
    %973 = vmatprep.subr.mxu0 0.0
    %974 = vmatpush1.msra.mxu0 0.0
    %975 = vmatprep.subr.mxu0 0.0
    %976 = vmatpush1.msra.mxu0 0.0
    %977 = vmatprep.subr.mxu0 0.0
    %978 = vmatpush1.msra.mxu0 0.0
    %979 = vmatprep.subr.mxu0 0.0
    %980 = vmatpush1.msra.mxu0 0.0
    %981 = vmatprep.mubr.f32.mxu0 0.0
    %982 = vmatmul.mubr.f32.gmra.mrb[0].mxu0 %v915
    %v983 = vpop.f32.mrb[0].mxu0
    %v984 = vadd.f32 0.0, %v983
    %v985 = vpop.f32.mrb[0].mxu0
    %986 = vdwg.mxu0
    %987 = vrot.lane.b32.xlu0 %v125, 64
    %v988 = vpop.permute.xlu0 %987
    %v991 = vsel %vm144, %v904, 0
    %993 = vmatprep.subr.mxu0 0.0
    %994 = vmatpush1.msra.mxu0 %v988
    %995 = vmatprep.subr.mxu0 0.0
    %996 = vmatpush1.msra.mxu0 0.0
    %997 = vmatprep.subr.mxu0 0.0
    %998 = vmatpush1.msra.mxu0 0.0
    %999 = vmatprep.subr.mxu0 0.0
    %1000 = vmatpush1.msra.mxu0 0.0
    %1001 = vmatprep.subr.mxu0 0.0
    %1002 = vmatpush1.msra.mxu0 0.0
    %1003 = vmatprep.subr.mxu0 0.0
    %1004 = vmatpush1.msra.mxu0 0.0
    %1005 = vmatprep.subr.mxu0 0.0
    %1006 = vmatpush1.msra.mxu0 0.0
    %1007 = vmatprep.subr.mxu0 0.0
    %1008 = vmatpush1.msra.mxu0 0.0
    %1009 = vmatprep.subr.mxu0 0.0
    %1010 = vmatpush1.msra.mxu0 0.0
    %1011 = vmatprep.subr.mxu0 0.0
    %1012 = vmatpush1.msra.mxu0 0.0
    %1013 = vmatprep.subr.mxu0 0.0
    %1014 = vmatpush1.msra.mxu0 0.0
    %1015 = vmatprep.subr.mxu0 0.0
    %1016 = vmatpush1.msra.mxu0 0.0
    %1017 = vmatprep.subr.mxu0 0.0
    %1018 = vmatpush1.msra.mxu0 0.0
    %1019 = vmatprep.subr.mxu0 0.0
    %1020 = vmatpush1.msra.mxu0 0.0
    %1021 = vmatprep.subr.mxu0 0.0
    %1022 = vmatpush1.msra.mxu0 0.0
    %1023 = vmatprep.subr.mxu0 0.0
    %1024 = vmatpush1.msra.mxu0 0.0
    %1025 = vmatprep.subr.mxu0 0.0
    %1026 = vmatpush1.msra.mxu0 0.0
    %1027 = vmatprep.subr.mxu0 0.0
    %1028 = vmatpush1.msra.mxu0 0.0
    %1029 = vmatprep.subr.mxu0 0.0
    %1030 = vmatpush1.msra.mxu0 0.0
    %1031 = vmatprep.subr.mxu0 0.0
    %1032 = vmatpush1.msra.mxu0 0.0
    %1033 = vmatprep.subr.mxu0 0.0
    %1034 = vmatpush1.msra.mxu0 0.0
    %1035 = vmatprep.subr.mxu0 0.0
    %1036 = vmatpush1.msra.mxu0 0.0
    %1037 = vmatprep.subr.mxu0 0.0
    %1038 = vmatpush1.msra.mxu0 0.0
    %1039 = vmatprep.subr.mxu0 0.0
    %1040 = vmatpush1.msra.mxu0 0.0
    %1041 = vmatprep.subr.mxu0 0.0
    %1042 = vmatpush1.msra.mxu0 0.0
    %1043 = vmatprep.subr.mxu0 0.0
    %1044 = vmatpush1.msra.mxu0 0.0
    %1045 = vmatprep.subr.mxu0 0.0
    %1046 = vmatpush1.msra.mxu0 0.0
    %1047 = vmatprep.subr.mxu0 0.0
    %1048 = vmatpush1.msra.mxu0 0.0
    %1049 = vmatprep.subr.mxu0 0.0
    %1050 = vmatpush1.msra.mxu0 0.0
    %1051 = vmatprep.subr.mxu0 0.0
    %1052 = vmatpush1.msra.mxu0 0.0
    %1053 = vmatprep.subr.mxu0 0.0
    %1054 = vmatpush1.msra.mxu0 0.0
    %1055 = vmatprep.subr.mxu0 0.0
    %1056 = vmatpush1.msra.mxu0 0.0
    %1057 = vmatprep.mubr.f32.mxu0 0.0
    %1058 = vmatmul.mubr.f32.gmra.mrb[0].mxu0 %v991
    %v1059 = vpop.f32.mrb[0].mxu0
    %v1060 = vadd.f32 0.0, %v1059
    %v1061 = vpop.f32.mrb[0].mxu0
    %1062 = vdwg.mxu0
    %1063 = vrot.lane.b32.xlu0 %v130, 64
    %v1064 = vpop.permute.xlu0 %1063
    %v1067 = vsel %vm144, %v905, 0
    %1069 = vmatprep.subr.mxu0 0.0
    %1070 = vmatpush1.msra.mxu0 %v1064
    %1071 = vmatprep.subr.mxu0 0.0
    %1072 = vmatpush1.msra.mxu0 0.0
    %1073 = vmatprep.subr.mxu0 0.0
    %1074 = vmatpush1.msra.mxu0 0.0
    %1075 = vmatprep.subr.mxu0 0.0
    %1076 = vmatpush1.msra.mxu0 0.0
    %1077 = vmatprep.subr.mxu0 0.0
    %1078 = vmatpush1.msra.mxu0 0.0
    %1079 = vmatprep.subr.mxu0 0.0
    %1080 = vmatpush1.msra.mxu0 0.0
    %1081 = vmatprep.subr.mxu0 0.0
    %1082 = vmatpush1.msra.mxu0 0.0
    %1083 = vmatprep.subr.mxu0 0.0
    %1084 = vmatpush1.msra.mxu0 0.0
    %1085 = vmatprep.subr.mxu0 0.0
    %1086 = vmatpush1.msra.mxu0 0.0
    %1087 = vmatprep.subr.mxu0 0.0
    %1088 = vmatpush1.msra.mxu0 0.0
    %1089 = vmatprep.subr.mxu0 0.0
    %1090 = vmatpush1.msra.mxu0 0.0
    %1091 = vmatprep.subr.mxu0 0.0
    %1092 = vmatpush1.msra.mxu0 0.0
    %1093 = vmatprep.subr.mxu0 0.0
    %1094 = vmatpush1.msra.mxu0 0.0
    %1095 = vmatprep.subr.mxu0 0.0
    %1096 = vmatpush1.msra.mxu0 0.0
    %1097 = vmatprep.subr.mxu0 0.0
    %1098 = vmatpush1.msra.mxu0 0.0
    %1099 = vmatprep.subr.mxu0 0.0
    %1100 = vmatpush1.msra.mxu0 0.0
    %1101 = vmatprep.subr.mxu0 0.0
    %1102 = vmatpush1.msra.mxu0 0.0
    %1103 = vmatprep.subr.mxu0 0.0
    %1104 = vmatpush1.msra.mxu0 0.0
    %1105 = vmatprep.subr.mxu0 0.0
    %1106 = vmatpush1.msra.mxu0 0.0
    %1107 = vmatprep.subr.mxu0 0.0
    %1108 = vmatpush1.msra.mxu0 0.0
    %1109 = vmatprep.subr.mxu0 0.0
    %1110 = vmatpush1.msra.mxu0 0.0
    %1111 = vmatprep.subr.mxu0 0.0
    %1112 = vmatpush1.msra.mxu0 0.0
    %1113 = vmatprep.subr.mxu0 0.0
    %1114 = vmatpush1.msra.mxu0 0.0
    %1115 = vmatprep.subr.mxu0 0.0
    %1116 = vmatpush1.msra.mxu0 0.0
    %1117 = vmatprep.subr.mxu0 0.0
    %1118 = vmatpush1.msra.mxu0 0.0
    %1119 = vmatprep.subr.mxu0 0.0
    %1120 = vmatpush1.msra.mxu0 0.0
    %1121 = vmatprep.subr.mxu0 0.0
    %1122 = vmatpush1.msra.mxu0 0.0
    %1123 = vmatprep.subr.mxu0 0.0
    %1124 = vmatpush1.msra.mxu0 0.0
    %1125 = vmatprep.subr.mxu0 0.0
    %1126 = vmatpush1.msra.mxu0 0.0
    %1127 = vmatprep.subr.mxu0 0.0
    %1128 = vmatpush1.msra.mxu0 0.0
    %1129 = vmatprep.subr.mxu0 0.0
    %1130 = vmatpush1.msra.mxu0 0.0
    %1131 = vmatprep.subr.mxu0 0.0
    %1132 = vmatpush1.msra.mxu0 0.0
    %1133 = vmatprep.mubr.f32.mxu0 0.0
    %1134 = vmatmul.mubr.f32.gmra.mrb[0].mxu0 %v1067
    %v1135 = vpop.f32.mrb[0].mxu0
    %v1136 = vadd.f32 0.0, %v1135
    %v1137 = vpop.f32.mrb[0].mxu0
    %1138 = vdwg.mxu0
    %1139 = vrot.lane.b32.xlu0 %v133, 64
    %v1140 = vpop.permute.xlu0 %1139
    %v1143 = vsel %vm144, %v906, 0
    %1145 = vmatprep.subr.mxu0 0.0
    %1146 = vmatpush1.msra.mxu0 %v1140
    %1147 = vmatprep.subr.mxu0 0.0
    %1148 = vmatpush1.msra.mxu0 0.0
    %1149 = vmatprep.subr.mxu0 0.0
    %1150 = vmatpush1.msra.mxu0 0.0
    %1151 = vmatprep.subr.mxu0 0.0
    %1152 = vmatpush1.msra.mxu0 0.0
    %1153 = vmatprep.subr.mxu0 0.0
    %1154 = vmatpush1.msra.mxu0 0.0
    %1155 = vmatprep.subr.mxu0 0.0
    %1156 = vmatpush1.msra.mxu0 0.0
    %1157 = vmatprep.subr.mxu0 0.0
    %1158 = vmatpush1.msra.mxu0 0.0
    %1159 = vmatprep.subr.mxu0 0.0
    %1160 = vmatpush1.msra.mxu0 0.0
    %1161 = vmatprep.subr.mxu0 0.0
    %1162 = vmatpush1.msra.mxu0 0.0
    %1163 = vmatprep.subr.mxu0 0.0
    %1164 = vmatpush1.msra.mxu0 0.0
    %1165 = vmatprep.subr.mxu0 0.0
    %1166 = vmatpush1.msra.mxu0 0.0
    %1167 = vmatprep.subr.mxu0 0.0
    %1168 = vmatpush1.msra.mxu0 0.0
    %1169 = vmatprep.subr.mxu0 0.0
    %1170 = vmatpush1.msra.mxu0 0.0
    %1171 = vmatprep.subr.mxu0 0.0
    %1172 = vmatpush1.msra.mxu0 0.0
    %1173 = vmatprep.subr.mxu0 0.0
    %1174 = vmatpush1.msra.mxu0 0.0
    %1175 = vmatprep.subr.mxu0 0.0
    %1176 = vmatpush1.msra.mxu0 0.0
    %1177 = vmatprep.subr.mxu0 0.0
    %1178 = vmatpush1.msra.mxu0 0.0
    %1179 = vmatprep.subr.mxu0 0.0
    %1180 = vmatpush1.msra.mxu0 0.0
    %1181 = vmatprep.subr.mxu0 0.0
    %1182 = vmatpush1.msra.mxu0 0.0
    %1183 = vmatprep.subr.mxu0 0.0
    %1184 = vmatpush1.msra.mxu0 0.0
    %1185 = vmatprep.subr.mxu0 0.0
    %1186 = vmatpush1.msra.mxu0 0.0
    %1187 = vmatprep.subr.mxu0 0.0
    %1188 = vmatpush1.msra.mxu0 0.0
    %1189 = vmatprep.subr.mxu0 0.0
    %1190 = vmatpush1.msra.mxu0 0.0
    %1191 = vmatprep.subr.mxu0 0.0
    %1192 = vmatpush1.msra.mxu0 0.0
    %1193 = vmatprep.subr.mxu0 0.0
    %1194 = vmatpush1.msra.mxu0 0.0
    %1195 = vmatprep.subr.mxu0 0.0
    %1196 = vmatpush1.msra.mxu0 0.0
    %1197 = vmatprep.subr.mxu0 0.0
    %1198 = vmatpush1.msra.mxu0 0.0
    %1199 = vmatprep.subr.mxu0 0.0
    %1200 = vmatpush1.msra.mxu0 0.0
    %1201 = vmatprep.subr.mxu0 0.0
    %1202 = vmatpush1.msra.mxu0 0.0
    %1203 = vmatprep.subr.mxu0 0.0
    %1204 = vmatpush1.msra.mxu0 0.0
    %1205 = vmatprep.subr.mxu0 0.0
    %1206 = vmatpush1.msra.mxu0 0.0
    %1207 = vmatprep.subr.mxu0 0.0
    %1208 = vmatpush1.msra.mxu0 0.0
    %1209 = vmatprep.mubr.f32.mxu0 0.0
    %1210 = vmatmul.mubr.f32.gmra.mrb[0].mxu0 %v1143
    %v1211 = vpop.f32.mrb[0].mxu0
    %v1212 = vadd.f32 0.0, %v1211
    %v1213 = vpop.f32.mrb[0].mxu0
    %1214 = vdwg.mxu0
    %1215 = vrot.lane.b32.xlu0 %v135, 64
    %v1216 = vpop.permute.xlu0 %1215
    %v1219 = vsel %vm144, %v907, 0
    %1221 = vmatprep.subr.mxu0 0.0
    %1222 = vmatpush1.msra.mxu0 %v1216
    %1223 = vmatprep.subr.mxu0 0.0
    %1224 = vmatpush1.msra.mxu0 0.0
    %1225 = vmatprep.subr.mxu0 0.0
    %1226 = vmatpush1.msra.mxu0 0.0
    %1227 = vmatprep.subr.mxu0 0.0
    %1228 = vmatpush1.msra.mxu0 0.0
    %1229 = vmatprep.subr.mxu0 0.0
    %1230 = vmatpush1.msra.mxu0 0.0
    %1231 = vmatprep.subr.mxu0 0.0
    %1232 = vmatpush1.msra.mxu0 0.0
    %1233 = vmatprep.subr.mxu0 0.0
    %1234 = vmatpush1.msra.mxu0 0.0
    %1235 = vmatprep.subr.mxu0 0.0
    %1236 = vmatpush1.msra.mxu0 0.0
    %1237 = vmatprep.subr.mxu0 0.0
    %1238 = vmatpush1.msra.mxu0 0.0
    %1239 = vmatprep.subr.mxu0 0.0
    %1240 = vmatpush1.msra.mxu0 0.0
    %1241 = vmatprep.subr.mxu0 0.0
    %1242 = vmatpush1.msra.mxu0 0.0
    %1243 = vmatprep.subr.mxu0 0.0
    %1244 = vmatpush1.msra.mxu0 0.0
    %1245 = vmatprep.subr.mxu0 0.0
    %1246 = vmatpush1.msra.mxu0 0.0
    %1247 = vmatprep.subr.mxu0 0.0
    %1248 = vmatpush1.msra.mxu0 0.0
    %1249 = vmatprep.subr.mxu0 0.0
    %1250 = vmatpush1.msra.mxu0 0.0
    %1251 = vmatprep.subr.mxu0 0.0
    %1252 = vmatpush1.msra.mxu0 0.0
    %1253 = vmatprep.subr.mxu0 0.0
    %1254 = vmatpush1.msra.mxu0 0.0
    %1255 = vmatprep.subr.mxu0 0.0
    %1256 = vmatpush1.msra.mxu0 0.0
    %1257 = vmatprep.subr.mxu0 0.0
    %1258 = vmatpush1.msra.mxu0 0.0
    %1259 = vmatprep.subr.mxu0 0.0
    %1260 = vmatpush1.msra.mxu0 0.0
    %1261 = vmatprep.subr.mxu0 0.0
    %1262 = vmatpush1.msra.mxu0 0.0
    %1263 = vmatprep.subr.mxu0 0.0
    %1264 = vmatpush1.msra.mxu0 0.0
    %1265 = vmatprep.subr.mxu0 0.0
    %1266 = vmatpush1.msra.mxu0 0.0
    %1267 = vmatprep.subr.mxu0 0.0
    %1268 = vmatpush1.msra.mxu0 0.0
    %1269 = vmatprep.subr.mxu0 0.0
    %1270 = vmatpush1.msra.mxu0 0.0
    %1271 = vmatprep.subr.mxu0 0.0
    %1272 = vmatpush1.msra.mxu0 0.0
    %1273 = vmatprep.subr.mxu0 0.0
    %1274 = vmatpush1.msra.mxu0 0.0
    %1275 = vmatprep.subr.mxu0 0.0
    %1276 = vmatpush1.msra.mxu0 0.0
    %1277 = vmatprep.subr.mxu0 0.0
    %1278 = vmatpush1.msra.mxu0 0.0
    %1279 = vmatprep.subr.mxu0 0.0
    %1280 = vmatpush1.msra.mxu0 0.0
    %1281 = vmatprep.subr.mxu0 0.0
    %1282 = vmatpush1.msra.mxu0 0.0
    %1283 = vmatprep.subr.mxu0 0.0
    %1284 = vmatpush1.msra.mxu0 0.0
    %1285 = vmatprep.mubr.f32.mxu0 0.0
    %1286 = vmatmul.mubr.f32.gmra.mrb[0].mxu0 %v1219
    %v1287 = vpop.f32.mrb[0].mxu0
    %v1288 = vadd.f32 0.0, %v1287
    %v1289 = vpop.f32.mrb[0].mxu0
    %1290 = vdwg.mxu0
    %1291 = vrot.lane.b32.xlu0 %v137, 64
    %v1292 = vpop.permute.xlu0 %1291
    %v1295 = vsel %vm144, %v908, 0
    %1297 = vmatprep.subr.mxu0 0.0
    %1298 = vmatpush1.msra.mxu0 %v1292
    %1299 = vmatprep.subr.mxu0 0.0
    %1300 = vmatpush1.msra.mxu0 0.0
    %1301 = vmatprep.subr.mxu0 0.0
    %1302 = vmatpush1.msra.mxu0 0.0
    %1303 = vmatprep.subr.mxu0 0.0
    %1304 = vmatpush1.msra.mxu0 0.0
    %1305 = vmatprep.subr.mxu0 0.0
    %1306 = vmatpush1.msra.mxu0 0.0
    %1307 = vmatprep.subr.mxu0 0.0
    %1308 = vmatpush1.msra.mxu0 0.0
    %1309 = vmatprep.subr.mxu0 0.0
    %1310 = vmatpush1.msra.mxu0 0.0
    %1311 = vmatprep.subr.mxu0 0.0
    %1312 = vmatpush1.msra.mxu0 0.0
    %1313 = vmatprep.subr.mxu0 0.0
    %1314 = vmatpush1.msra.mxu0 0.0
    %1315 = vmatprep.subr.mxu0 0.0
    %1316 = vmatpush1.msra.mxu0 0.0
    %1317 = vmatprep.subr.mxu0 0.0
    %1318 = vmatpush1.msra.mxu0 0.0
    %1319 = vmatprep.subr.mxu0 0.0
    %1320 = vmatpush1.msra.mxu0 0.0
    %1321 = vmatprep.subr.mxu0 0.0
    %1322 = vmatpush1.msra.mxu0 0.0
    %1323 = vmatprep.subr.mxu0 0.0
    %1324 = vmatpush1.msra.mxu0 0.0
    %1325 = vmatprep.subr.mxu0 0.0
    %1326 = vmatpush1.msra.mxu0 0.0
    %1327 = vmatprep.subr.mxu0 0.0
    %1328 = vmatpush1.msra.mxu0 0.0
    %1329 = vmatprep.subr.mxu0 0.0
    %1330 = vmatpush1.msra.mxu0 0.0
    %1331 = vmatprep.subr.mxu0 0.0
    %1332 = vmatpush1.msra.mxu0 0.0
    %1333 = vmatprep.subr.mxu0 0.0
    %1334 = vmatpush1.msra.mxu0 0.0
    %1335 = vmatprep.subr.mxu0 0.0
    %1336 = vmatpush1.msra.mxu0 0.0
    %1337 = vmatprep.subr.mxu0 0.0
    %1338 = vmatpush1.msra.mxu0 0.0
    %1339 = vmatprep.subr.mxu0 0.0
    %1340 = vmatpush1.msra.mxu0 0.0
    %1341 = vmatprep.subr.mxu0 0.0
    %1342 = vmatpush1.msra.mxu0 0.0
    %1343 = vmatprep.subr.mxu0 0.0
    %1344 = vmatpush1.msra.mxu0 0.0
    %1345 = vmatprep.subr.mxu0 0.0
    %1346 = vmatpush1.msra.mxu0 0.0
    %1347 = vmatprep.subr.mxu0 0.0
    %1348 = vmatpush1.msra.mxu0 0.0
    %1349 = vmatprep.subr.mxu0 0.0
    %1350 = vmatpush1.msra.mxu0 0.0
    %1351 = vmatprep.subr.mxu0 0.0
    %1352 = vmatpush1.msra.mxu0 0.0
    %1353 = vmatprep.subr.mxu0 0.0
    %1354 = vmatpush1.msra.mxu0 0.0
    %1355 = vmatprep.subr.mxu0 0.0
    %1356 = vmatpush1.msra.mxu0 0.0
    %1357 = vmatprep.subr.mxu0 0.0
    %1358 = vmatpush1.msra.mxu0 0.0
    %1359 = vmatprep.subr.mxu0 0.0
    %1360 = vmatpush1.msra.mxu0 0.0
    %1361 = vmatprep.mubr.f32.mxu0 0.0
    %1362 = vmatmul.mubr.f32.gmra.mrb[0].mxu0 %v1295
    %v1363 = vpop.f32.mrb[0].mxu0
    %v1364 = vadd.f32 0.0, %v1363
    %v1365 = vpop.f32.mrb[0].mxu0
    %1366 = vdwg.mxu0
    %1367 = vrot.lane.b32.xlu0 %v139, 64
    %v1368 = vpop.permute.xlu0 %1367
    %v1371 = vsel %vm144, %v909, 0
    %1373 = vmatprep.subr.mxu0 0.0
    %1374 = vmatpush1.msra.mxu0 %v1368
    %1375 = vmatprep.subr.mxu0 0.0
    %1376 = vmatpush1.msra.mxu0 0.0
    %1377 = vmatprep.subr.mxu0 0.0
    %1378 = vmatpush1.msra.mxu0 0.0
    %1379 = vmatprep.subr.mxu0 0.0
    %1380 = vmatpush1.msra.mxu0 0.0
    %1381 = vmatprep.subr.mxu0 0.0
    %1382 = vmatpush1.msra.mxu0 0.0
    %1383 = vmatprep.subr.mxu0 0.0
    %1384 = vmatpush1.msra.mxu0 0.0
    %1385 = vmatprep.subr.mxu0 0.0
    %1386 = vmatpush1.msra.mxu0 0.0
    %1387 = vmatprep.subr.mxu0 0.0
    %1388 = vmatpush1.msra.mxu0 0.0
    %1389 = vmatprep.subr.mxu0 0.0
    %1390 = vmatpush1.msra.mxu0 0.0
    %1391 = vmatprep.subr.mxu0 0.0
    %1392 = vmatpush1.msra.mxu0 0.0
    %1393 = vmatprep.subr.mxu0 0.0
    %1394 = vmatpush1.msra.mxu0 0.0
    %1395 = vmatprep.subr.mxu0 0.0
    %1396 = vmatpush1.msra.mxu0 0.0
    %1397 = vmatprep.subr.mxu0 0.0
    %1398 = vmatpush1.msra.mxu0 0.0
    %1399 = vmatprep.subr.mxu0 0.0
    %1400 = vmatpush1.msra.mxu0 0.0
    %1401 = vmatprep.subr.mxu0 0.0
    %1402 = vmatpush1.msra.mxu0 0.0
    %1403 = vmatprep.subr.mxu0 0.0
    %1404 = vmatpush1.msra.mxu0 0.0
    %1405 = vmatprep.subr.mxu0 0.0
    %1406 = vmatpush1.msra.mxu0 0.0
    %1407 = vmatprep.subr.mxu0 0.0
    %1408 = vmatpush1.msra.mxu0 0.0
    %1409 = vmatprep.subr.mxu0 0.0
    %1410 = vmatpush1.msra.mxu0 0.0
    %1411 = vmatprep.subr.mxu0 0.0
    %1412 = vmatpush1.msra.mxu0 0.0
    %1413 = vmatprep.subr.mxu0 0.0
    %1414 = vmatpush1.msra.mxu0 0.0
    %1415 = vmatprep.subr.mxu0 0.0
    %1416 = vmatpush1.msra.mxu0 0.0
    %1417 = vmatprep.subr.mxu0 0.0
    %1418 = vmatpush1.msra.mxu0 0.0
    %1419 = vmatprep.subr.mxu0 0.0
    %1420 = vmatpush1.msra.mxu0 0.0
    %1421 = vmatprep.subr.mxu0 0.0
    %1422 = vmatpush1.msra.mxu0 0.0
    %1423 = vmatprep.subr.mxu0 0.0
    %1424 = vmatpush1.msra.mxu0 0.0
    %1425 = vmatprep.subr.mxu0 0.0
    %1426 = vmatpush1.msra.mxu0 0.0
    %1427 = vmatprep.subr.mxu0 0.0
    %1428 = vmatpush1.msra.mxu0 0.0
    %1429 = vmatprep.subr.mxu0 0.0
    %1430 = vmatpush1.msra.mxu0 0.0
    %1431 = vmatprep.subr.mxu0 0.0
    %1432 = vmatpush1.msra.mxu0 0.0
    %1433 = vmatprep.subr.mxu0 0.0
    %1434 = vmatpush1.msra.mxu0 0.0
    %1435 = vmatprep.subr.mxu0 0.0
    %1436 = vmatpush1.msra.mxu0 0.0
    %1437 = vmatprep.mubr.f32.mxu0 0.0
    %1438 = vmatmul.mubr.f32.gmra.mrb[0].mxu0 %v1371
    %v1439 = vpop.f32.mrb[0].mxu0
    %v1440 = vadd.f32 0.0, %v1439
    %v1441 = vpop.f32.mrb[0].mxu0
    %1442 = vdwg.mxu0
    %1443 = vrot.lane.b32.xlu0 %v141, 64
    %v1444 = vpop.permute.xlu0 %1443
    %v1447 = vsel %vm144, %v910, 0
    %1449 = vmatprep.subr.mxu0 0.0
    %1450 = vmatpush1.msra.mxu0 %v1444
    %1451 = vmatprep.subr.mxu0 0.0
    %1452 = vmatpush1.msra.mxu0 0.0
    %1453 = vmatprep.subr.mxu0 0.0
    %1454 = vmatpush1.msra.mxu0 0.0
    %1455 = vmatprep.subr.mxu0 0.0
    %1456 = vmatpush1.msra.mxu0 0.0
    %1457 = vmatprep.subr.mxu0 0.0
    %1458 = vmatpush1.msra.mxu0 0.0
    %1459 = vmatprep.subr.mxu0 0.0
    %1460 = vmatpush1.msra.mxu0 0.0
    %1461 = vmatprep.subr.mxu0 0.0
    %1462 = vmatpush1.msra.mxu0 0.0
    %1463 = vmatprep.subr.mxu0 0.0
    %1464 = vmatpush1.msra.mxu0 0.0
    %1465 = vmatprep.subr.mxu0 0.0
    %1466 = vmatpush1.msra.mxu0 0.0
    %1467 = vmatprep.subr.mxu0 0.0
    %1468 = vmatpush1.msra.mxu0 0.0
    %1469 = vmatprep.subr.mxu0 0.0
    %1470 = vmatpush1.msra.mxu0 0.0
    %1471 = vmatprep.subr.mxu0 0.0
    %1472 = vmatpush1.msra.mxu0 0.0
    %1473 = vmatprep.subr.mxu0 0.0
    %1474 = vmatpush1.msra.mxu0 0.0
    %1475 = vmatprep.subr.mxu0 0.0
    %1476 = vmatpush1.msra.mxu0 0.0
    %1477 = vmatprep.subr.mxu0 0.0
    %1478 = vmatpush1.msra.mxu0 0.0
    %1479 = vmatprep.subr.mxu0 0.0
    %1480 = vmatpush1.msra.mxu0 0.0
    %1481 = vmatprep.subr.mxu0 0.0
    %1482 = vmatpush1.msra.mxu0 0.0
    %1483 = vmatprep.subr.mxu0 0.0
    %1484 = vmatpush1.msra.mxu0 0.0
    %1485 = vmatprep.subr.mxu0 0.0
    %1486 = vmatpush1.msra.mxu0 0.0
    %1487 = vmatprep.subr.mxu0 0.0
    %1488 = vmatpush1.msra.mxu0 0.0
    %1489 = vmatprep.subr.mxu0 0.0
    %1490 = vmatpush1.msra.mxu0 0.0
    %1491 = vmatprep.subr.mxu0 0.0
    %1492 = vmatpush1.msra.mxu0 0.0
    %1493 = vmatprep.subr.mxu0 0.0
    %1494 = vmatpush1.msra.mxu0 0.0
    %1495 = vmatprep.subr.mxu0 0.0
    %1496 = vmatpush1.msra.mxu0 0.0
    %1497 = vmatprep.subr.mxu0 0.0
    %1498 = vmatpush1.msra.mxu0 0.0
    %1499 = vmatprep.subr.mxu0 0.0
    %1500 = vmatpush1.msra.mxu0 0.0
    %1501 = vmatprep.subr.mxu0 0.0
    %1502 = vmatpush1.msra.mxu0 0.0
    %1503 = vmatprep.subr.mxu0 0.0
    %1504 = vmatpush1.msra.mxu0 0.0
    %1505 = vmatprep.subr.mxu0 0.0
    %1506 = vmatpush1.msra.mxu0 0.0
    %1507 = vmatprep.subr.mxu0 0.0
    %1508 = vmatpush1.msra.mxu0 0.0
    %1509 = vmatprep.subr.mxu0 0.0
    %1510 = vmatpush1.msra.mxu0 0.0
    %1511 = vmatprep.subr.mxu0 0.0
    %1512 = vmatpush1.msra.mxu0 0.0
    %1513 = vmatprep.mubr.f32.mxu0 0.0
    %1514 = vmatmul.mubr.f32.gmra.mrb[0].mxu0 %v1447
    %v1515 = vpop.f32.mrb[0].mxu0
    %v1516 = vadd.f32 0.0, %v1515
    %v1517 = vpop.f32.mrb[0].mxu0
    %1518 = vdwg.mxu0
    %1521 = vrot.lane.b32.xlu0 %v1136, 8
    %v1522 = vpop.permute.xlu0 %1521
    %1523 = vrot.lane.b32.xlu0 %v1212, 8
    %v1524 = vpop.permute.xlu0 %1523
    %1529 = vrot.lane.b32.xlu0 %v1288, 16
    %v1530 = vpop.permute.xlu0 %1529
    %1531 = vrot.lane.b32.xlu0 %v1364, 16
    %v1532 = vpop.permute.xlu0 %1531
    %1537 = vrot.lane.b32.xlu0 %v1440, 24
    %v1538 = vpop.permute.xlu0 %1537
    %1539 = vrot.lane.b32.xlu0 %v1516, 24
    %v1540 = vpop.permute.xlu0 %1539
    %v1543 = vsel %vm144, %v984, %v1522
    %v1544 = vsel %vm144, %v1060, %v1524
    %vm1545 = vcmask 130048
    %v1546 = vsel %vm1545, %v1543, %v1530
    %v1547 = vsel %vm1545, %v1544, %v1532
    %vm1548 = vcmask 195584
    %v1549 = vsel %vm1548, %v1546, %v1538
    %v1550 = vsel %vm1548, %v1547, %v1540
    %v1551 = vld [vmem:[%s3] sm:$0xff]
    %v1552 = vld [vmem:[%s3 + $0x8] sm:$0xff]
    %v1553 = vld [vmem:[%s3 + $0x10] sm:$0xff]
    %v1554 = vld [vmem:[%s3 + $0x18] sm:$0xff]
    %v1555 = vld [vmem:[%s3 + $0x20] sm:$0x1]
    %v1556 = vlaneseq
    %v1557 = vshrl.u32 %v1556, 7
    %v1558 = vsub.s32 0, %v1557
    %v1559 = vrot.slane %v1555, %v1558
    %v1561 = vsel %vm46, %v1549, 0
    %v1564 = vsel %vm46, %v1550, 0
    %1566 = vmatprep.subr.mxu0 0.0
    %1567 = vmatpush1.msra.mxu0 %v1551
    %1568 = vmatprep.subr.mxu0 0.0
    %1569 = vmatpush1.msra.mxu0 %v1552
    %1570 = vmatprep.subr.mxu0 0.0
    %1571 = vmatpush1.msra.mxu0 %v1553
    %1572 = vmatprep.subr.mxu0 0.0
    %1573 = vmatpush1.msra.mxu0 %v1554
    %1574 = vmatprep.subr.mxu0 0.0
    %1575 = vmatpush1.msra.mxu0 0.0
    %1576 = vmatprep.subr.mxu0 0.0
    %1577 = vmatpush1.msra.mxu0 0.0
    %1578 = vmatprep.subr.mxu0 0.0
    %1579 = vmatpush1.msra.mxu0 0.0
    %1580 = vmatprep.subr.mxu0 0.0
    %1581 = vmatpush1.msra.mxu0 0.0
    %1582 = vmatprep.subr.mxu0 0.0
    %1583 = vmatpush1.msra.mxu0 0.0
    %1584 = vmatprep.subr.mxu0 0.0
    %1585 = vmatpush1.msra.mxu0 0.0
    %1586 = vmatprep.subr.mxu0 0.0
    %1587 = vmatpush1.msra.mxu0 0.0
    %1588 = vmatprep.subr.mxu0 0.0
    %1589 = vmatpush1.msra.mxu0 0.0
    %1590 = vmatprep.subr.mxu0 0.0
    %1591 = vmatpush1.msra.mxu0 0.0
    %1592 = vmatprep.subr.mxu0 0.0
    %1593 = vmatpush1.msra.mxu0 0.0
    %1594 = vmatprep.subr.mxu0 0.0
    %1595 = vmatpush1.msra.mxu0 0.0
    %1596 = vmatprep.subr.mxu0 0.0
    %1597 = vmatpush1.msra.mxu0 0.0
    %1598 = vmatprep.subr.mxu0 0.0
    %1599 = vmatpush1.msra.mxu0 0.0
    %1600 = vmatprep.subr.mxu0 0.0
    %1601 = vmatpush1.msra.mxu0 0.0
    %1602 = vmatprep.subr.mxu0 0.0
    %1603 = vmatpush1.msra.mxu0 0.0
    %1604 = vmatprep.subr.mxu0 0.0
    %1605 = vmatpush1.msra.mxu0 0.0
    %1606 = vmatprep.subr.mxu0 0.0
    %1607 = vmatpush1.msra.mxu0 0.0
    %1608 = vmatprep.subr.mxu0 0.0
    %1609 = vmatpush1.msra.mxu0 0.0
    %1610 = vmatprep.subr.mxu0 0.0
    %1611 = vmatpush1.msra.mxu0 0.0
    %1612 = vmatprep.subr.mxu0 0.0
    %1613 = vmatpush1.msra.mxu0 0.0
    %1614 = vmatprep.subr.mxu0 0.0
    %1615 = vmatpush1.msra.mxu0 0.0
    %1616 = vmatprep.subr.mxu0 0.0
    %1617 = vmatpush1.msra.mxu0 0.0
    %1618 = vmatprep.subr.mxu0 0.0
    %1619 = vmatpush1.msra.mxu0 0.0
    %1620 = vmatprep.subr.mxu0 0.0
    %1621 = vmatpush1.msra.mxu0 0.0
    %1622 = vmatprep.subr.mxu0 0.0
    %1623 = vmatpush1.msra.mxu0 0.0
    %1624 = vmatprep.subr.mxu0 0.0
    %1625 = vmatpush1.msra.mxu0 0.0
    %1626 = vmatprep.subr.mxu0 0.0
    %1627 = vmatpush1.msra.mxu0 0.0
    %1628 = vmatprep.subr.mxu0 0.0
    %1629 = vmatpush1.msra.mxu0 0.0
    %1630 = vmatprep.mubr.f32.mxu0 0.0
    %1631 = vmatmul.mubr.f32.gmra.mrb[0].mxu0 %v1561
    %v1632 = vpop.f32.mrb[0].mxu0
    %v1633 = vadd.f32 %v1559, %v1632
    %v1634 = vpop.f32.mrb[0].mxu0
    %1635 = vmatprep.mubr.f32.mxu0 0.0
    %1636 = vmatmul.mubr.f32.gmra.mrb[0].mxu0 %v1564
    %v1637 = vpop.f32.mrb[0].mxu0
    %v1638 = vadd.f32 %v1559, %v1637
    %v1639 = vpop.f32.mrb[0].mxu0
    %1640 = vdwg.mxu0
    %v1641 = vadd.f32 %v35, %v1633
    %v1642 = vadd.f32 %v36, %v1638
    %v1643 = vld [vmem:[%s4] sm:$0x1]
    %v1644 = vld [vmem:[%s4 + $0x1] sm:$0x1]
    %v1645 = vsel %vm46, %v1641, 0.0
    %1646 = vadd.xlane.f32.xlu0 %v1645
    %v1647 = vpop.xlane.xlu0 %1646
    %v1648 = vsel %vm46, %v1642, 0.0
    %1649 = vadd.xlane.f32.xlu0 %v1648
    %v1650 = vpop.xlane.xlu0 %1649
    %v1651 = vrcp.pop 32.0
    %v1652 = vmul.f32 %v1647, %v1651
    %v1653 = vmul.f32 %v1650, %v1651
    %v1654 = vsub.f32 %v1641, %v1652
    %v1655 = vsub.f32 %v1642, %v1653
    %v1656 = vmul.f32 %v1654, %v1654
    %v1657 = vmul.f32 %v1655, %v1655
    %v1658 = vsel %vm46, %v1656, 0.0
    %1659 = vadd.xlane.f32.xlu0 %v1658
    %v1660 = vpop.xlane.xlu0 %1659
    %v1661 = vsel %vm46, %v1657, 0.0
    %1662 = vadd.xlane.f32.xlu0 %v1661
    %v1663 = vpop.xlane.xlu0 %1662
    %v1664 = vmul.f32 %v1660, %v1651
    %v1665 = vmul.f32 %v1663, %v1651
    %v1666 = vadd.f32 %v1664, 1e-06
    %v1667 = vadd.f32 %v1665, 1e-06
    %v1668 = vrsqrt.pop %v1666
    %v1669 = vrsqrt.pop %v1667
    %v1670 = vmul.f32 %v1654, %v1668
    %v1671 = vmul.f32 %v1655, %v1669
    %v1672 = vlaneseq
    %v1673 = vshrl.u32 %v1672, 7
    %v1674 = vsub.s32 0, %v1673
    %v1675 = vrot.slane %v1643, %v1674
    %v1676 = vmul.f32 %v1670, %v1675
    %v1677 = vmul.f32 %v1671, %v1675
    %v1678 = vlaneseq
    %v1679 = vshrl.u32 %v1678, 7
    %v1680 = vsub.s32 0, %v1679
    %v1681 = vrot.slane %v1644, %v1680
    %v1682 = vadd.f32 %v1676, %v1681
    %v1683 = vadd.f32 %v1677, %v1681
    %v1684 = vld [vmem:[%s5] sm:$0xff]
    %v1685 = vld [vmem:[%s5 + $0x8] sm:$0xff]
    %v1686 = vld [vmem:[%s5 + $0x10] sm:$0xff]
    %v1687 = vld [vmem:[%s5 + $0x18] sm:$0xff]
    %v1688 = vld [vmem:[%s5 + $0x20] sm:$0x1]
    %v1689 = vlaneseq
    %v1690 = vshrl.u32 %v1689, 7
    %v1691 = vsub.s32 0, %v1690
    %v1692 = vrot.slane %v1688, %v1691
    %v1694 = vsel %vm46, %v1682, 0
    %v1697 = vsel %vm46, %v1683, 0
    %1699 = vmatprep.subr.mxu0 0.0
    %1700 = vmatpush1.msra.mxu0 %v1684
    %1701 = vmatprep.subr.mxu0 0.0
    %1702 = vmatpush1.msra.mxu0 %v1685
    %1703 = vmatprep.subr.mxu0 0.0
    %1704 = vmatpush1.msra.mxu0 %v1686
    %1705 = vmatprep.subr.mxu0 0.0
    %1706 = vmatpush1.msra.mxu0 %v1687
    %1707 = vmatprep.subr.mxu0 0.0
    %1708 = vmatpush1.msra.mxu0 0.0
    %1709 = vmatprep.subr.mxu0 0.0
    %1710 = vmatpush1.msra.mxu0 0.0
    %1711 = vmatprep.subr.mxu0 0.0
    %1712 = vmatpush1.msra.mxu0 0.0
    %1713 = vmatprep.subr.mxu0 0.0
    %1714 = vmatpush1.msra.mxu0 0.0
    %1715 = vmatprep.subr.mxu0 0.0
    %1716 = vmatpush1.msra.mxu0 0.0
    %1717 = vmatprep.subr.mxu0 0.0
    %1718 = vmatpush1.msra.mxu0 0.0
    %1719 = vmatprep.subr.mxu0 0.0
    %1720 = vmatpush1.msra.mxu0 0.0
    %1721 = vmatprep.subr.mxu0 0.0
    %1722 = vmatpush1.msra.mxu0 0.0
    %1723 = vmatprep.subr.mxu0 0.0
    %1724 = vmatpush1.msra.mxu0 0.0
    %1725 = vmatprep.subr.mxu0 0.0
    %1726 = vmatpush1.msra.mxu0 0.0
    %1727 = vmatprep.subr.mxu0 0.0
    %1728 = vmatpush1.msra.mxu0 0.0
    %1729 = vmatprep.subr.mxu0 0.0
    %1730 = vmatpush1.msra.mxu0 0.0
    %1731 = vmatprep.subr.mxu0 0.0
    %1732 = vmatpush1.msra.mxu0 0.0
    %1733 = vmatprep.subr.mxu0 0.0
    %1734 = vmatpush1.msra.mxu0 0.0
    %1735 = vmatprep.subr.mxu0 0.0
    %1736 = vmatpush1.msra.mxu0 0.0
    %1737 = vmatprep.subr.mxu0 0.0
    %1738 = vmatpush1.msra.mxu0 0.0
    %1739 = vmatprep.subr.mxu0 0.0
    %1740 = vmatpush1.msra.mxu0 0.0
    %1741 = vmatprep.subr.mxu0 0.0
    %1742 = vmatpush1.msra.mxu0 0.0
    %1743 = vmatprep.subr.mxu0 0.0
    %1744 = vmatpush1.msra.mxu0 0.0
    %1745 = vmatprep.subr.mxu0 0.0
    %1746 = vmatpush1.msra.mxu0 0.0
    %1747 = vmatprep.subr.mxu0 0.0
    %1748 = vmatpush1.msra.mxu0 0.0
    %1749 = vmatprep.subr.mxu0 0.0
    %1750 = vmatpush1.msra.mxu0 0.0
    %1751 = vmatprep.subr.mxu0 0.0
    %1752 = vmatpush1.msra.mxu0 0.0
    %1753 = vmatprep.subr.mxu0 0.0
    %1754 = vmatpush1.msra.mxu0 0.0
    %1755 = vmatprep.subr.mxu0 0.0
    %1756 = vmatpush1.msra.mxu0 0.0
    %1757 = vmatprep.subr.mxu0 0.0
    %1758 = vmatpush1.msra.mxu0 0.0
    %1759 = vmatprep.subr.mxu0 0.0
    %1760 = vmatpush1.msra.mxu0 0.0
    %1761 = vmatprep.subr.mxu0 0.0
    %1762 = vmatpush1.msra.mxu0 0.0
    %1763 = vmatprep.mubr.f32.mxu0 0.0
    %1764 = vmatmul.mubr.f32.gmra.mrb[0].mxu0 %v1694
    %v1765 = vpop.f32.mrb[0].mxu0
    %v1766 = vadd.f32 %v1692, %v1765
    %v1767 = vpop.f32.mrb[0].mxu0
    %1768 = vmatprep.mubr.f32.mxu0 0.0
    %1769 = vmatmul.mubr.f32.gmra.mrb[0].mxu0 %v1697
    %v1770 = vpop.f32.mrb[0].mxu0
    %v1771 = vadd.f32 %v1692, %v1770
    %v1772 = vpop.f32.mrb[0].mxu0
    %1773 = vdwg.mxu0
    %v1774 = vmul.f32 %v1766, %v1766
    %v1775 = vmul.f32 %v1771, %v1771
    %v1776 = vmul.f32 %v1766, %v1774
    %v1777 = vmul.f32 %v1771, %v1775
    %v1778 = vmul.f32 %v1776, 0.044715
    %v1779 = vmul.f32 %v1777, 0.044715
    %v1780 = vadd.f32 %v1766, %v1778
    %v1781 = vadd.f32 %v1771, %v1779
    %v1782 = vmul.f32 %v1780, 0.7978846
    %v1783 = vmul.f32 %v1781, 0.7978846
    %v1784 = vtanh.pop %v1782
    %v1785 = vtanh.pop %v1783
    %v1786 = vadd.f32 %v1784, 1.0
    %v1787 = vadd.f32 %v1785, 1.0
    %v1788 = vmul.f32 %v1786, 0.5
    %v1789 = vmul.f32 %v1787, 0.5
    %v1790 = vmul.f32 %v1766, %v1788
    %v1791 = vmul.f32 %v1771, %v1789
    %v1792 = vld [vmem:[%s6] sm:$0xff]
    %v1793 = vld [vmem:[%s6 + $0x8] sm:$0xff]
    %v1794 = vld [vmem:[%s6 + $0x10] sm:$0xff]
    %v1795 = vld [vmem:[%s6 + $0x18] sm:$0xff]
    %v1796 = vld [vmem:[%s6 + $0x20] sm:$0xff]
    %v1797 = vld [vmem:[%s6 + $0x28] sm:$0xff]
    %v1798 = vld [vmem:[%s6 + $0x30] sm:$0xff]
    %v1799 = vld [vmem:[%s6 + $0x38] sm:$0xff]
    %v1800 = vld [vmem:[%s6 + $0x40] sm:$0xff]
    %v1801 = vld [vmem:[%s6 + $0x48] sm:$0xff]
    %v1802 = vld [vmem:[%s6 + $0x50] sm:$0xff]
    %v1803 = vld [vmem:[%s6 + $0x58] sm:$0xff]
    %v1804 = vld [vmem:[%s6 + $0x60] sm:$0xff]
    %v1805 = vld [vmem:[%s6 + $0x68] sm:$0xff]
    %v1806 = vld [vmem:[%s6 + $0x70] sm:$0xff]
    %v1807 = vld [vmem:[%s6 + $0x78] sm:$0xff]
    %v1808 = vld [vmem:[%s6 + $0x80] sm:$0x1]
    %v1809 = vlaneseq
    %v1810 = vshrl.u32 %v1809, 7
    %v1811 = vsub.s32 0, %v1810
    %v1812 = vrot.slane %v1808, %v1811
    %1813 = vmatprep.subr.mxu0 0.0
    %1814 = vmatpush1.msra.mxu0 %v1792
    %1815 = vmatprep.subr.mxu0 0.0
    %1816 = vmatpush1.msra.mxu0 %v1793
    %1817 = vmatprep.subr.mxu0 0.0
    %1818 = vmatpush1.msra.mxu0 %v1794
    %1819 = vmatprep.subr.mxu0 0.0
    %1820 = vmatpush1.msra.mxu0 %v1795
    %1821 = vmatprep.subr.mxu0 0.0
    %1822 = vmatpush1.msra.mxu0 %v1796
    %1823 = vmatprep.subr.mxu0 0.0
    %1824 = vmatpush1.msra.mxu0 %v1797
    %1825 = vmatprep.subr.mxu0 0.0
    %1826 = vmatpush1.msra.mxu0 %v1798
    %1827 = vmatprep.subr.mxu0 0.0
    %1828 = vmatpush1.msra.mxu0 %v1799
    %1829 = vmatprep.subr.mxu0 0.0
    %1830 = vmatpush1.msra.mxu0 %v1800
    %1831 = vmatprep.subr.mxu0 0.0
    %1832 = vmatpush1.msra.mxu0 %v1801
    %1833 = vmatprep.subr.mxu0 0.0
    %1834 = vmatpush1.msra.mxu0 %v1802
    %1835 = vmatprep.subr.mxu0 0.0
    %1836 = vmatpush1.msra.mxu0 %v1803
    %1837 = vmatprep.subr.mxu0 0.0
    %1838 = vmatpush1.msra.mxu0 %v1804
    %1839 = vmatprep.subr.mxu0 0.0
    %1840 = vmatpush1.msra.mxu0 %v1805
    %1841 = vmatprep.subr.mxu0 0.0
    %1842 = vmatpush1.msra.mxu0 %v1806
    %1843 = vmatprep.subr.mxu0 0.0
    %1844 = vmatpush1.msra.mxu0 %v1807
    %1845 = vmatprep.subr.mxu0 0.0
    %1846 = vmatpush1.msra.mxu0 0.0
    %1847 = vmatprep.subr.mxu0 0.0
    %1848 = vmatpush1.msra.mxu0 0.0
    %1849 = vmatprep.subr.mxu0 0.0
    %1850 = vmatpush1.msra.mxu0 0.0
    %1851 = vmatprep.subr.mxu0 0.0
    %1852 = vmatpush1.msra.mxu0 0.0
    %1853 = vmatprep.subr.mxu0 0.0
    %1854 = vmatpush1.msra.mxu0 0.0
    %1855 = vmatprep.subr.mxu0 0.0
    %1856 = vmatpush1.msra.mxu0 0.0
    %1857 = vmatprep.subr.mxu0 0.0
    %1858 = vmatpush1.msra.mxu0 0.0
    %1859 = vmatprep.subr.mxu0 0.0
    %1860 = vmatpush1.msra.mxu0 0.0
    %1861 = vmatprep.subr.mxu0 0.0
    %1862 = vmatpush1.msra.mxu0 0.0
    %1863 = vmatprep.subr.mxu0 0.0
    %1864 = vmatpush1.msra.mxu0 0.0
    %1865 = vmatprep.subr.mxu0 0.0
    %1866 = vmatpush1.msra.mxu0 0.0
    %1867 = vmatprep.subr.mxu0 0.0
    %1868 = vmatpush1.msra.mxu0 0.0
    %1869 = vmatprep.subr.mxu0 0.0
    %1870 = vmatpush1.msra.mxu0 0.0
    %1871 = vmatprep.subr.mxu0 0.0
    %1872 = vmatpush1.msra.mxu0 0.0
    %1873 = vmatprep.subr.mxu0 0.0
    %1874 = vmatpush1.msra.mxu0 0.0
    %1875 = vmatprep.subr.mxu0 0.0
    %1876 = vmatpush1.msra.mxu0 0.0
    %1877 = vmatprep.mubr.f32.mxu0 0.0
    %1878 = vmatmul.mubr.f32.gmra.mrb[0].mxu0 %v1790
    %v1879 = vpop.f32.mrb[0].mxu0
    %v1880 = vadd.f32 %v1812, %v1879
    %v1881 = vpop.f32.mrb[0].mxu0
    %1882 = vmatprep.mubr.f32.mxu0 0.0
    %1883 = vmatmul.mubr.f32.gmra.mrb[0].mxu0 %v1791
    %v1884 = vpop.f32.mrb[0].mxu0
    %v1885 = vadd.f32 %v1812, %v1884
    %v1886 = vpop.f32.mrb[0].mxu0
    %1887 = vdwg.mxu0
    %v1888 = vadd.f32 %v1682, %v1880
    %v1889 = vadd.f32 %v1683, %v1885
    %v1890 = vld [vmem:[%s4 + $0x2] sm:$0x1]
    %v1891 = vld [vmem:[%s4 + $0x3] sm:$0x1]
    %v1892 = vsel %vm46, %v1888, 0.0
    %1893 = vadd.xlane.f32.xlu0 %v1892
    %v1894 = vpop.xlane.xlu0 %1893
    %v1895 = vsel %vm46, %v1889, 0.0
    %1896 = vadd.xlane.f32.xlu0 %v1895
    %v1897 = vpop.xlane.xlu0 %1896
    %v1898 = vmul.f32 %v1894, %v1651
    %v1899 = vmul.f32 %v1897, %v1651
    %v1900 = vsub.f32 %v1888, %v1898
    %v1901 = vsub.f32 %v1889, %v1899
    %v1902 = vmul.f32 %v1900, %v1900
    %v1903 = vmul.f32 %v1901, %v1901
    %v1904 = vsel %vm46, %v1902, 0.0
    %1905 = vadd.xlane.f32.xlu0 %v1904
    %v1906 = vpop.xlane.xlu0 %1905
    %v1907 = vsel %vm46, %v1903, 0.0
    %1908 = vadd.xlane.f32.xlu0 %v1907
    %v1909 = vpop.xlane.xlu0 %1908
    %v1910 = vmul.f32 %v1906, %v1651
    %v1911 = vmul.f32 %v1909, %v1651
    %v1912 = vadd.f32 %v1910, 1e-06
    %v1913 = vadd.f32 %v1911, 1e-06
    %v1914 = vrsqrt.pop %v1912
    %v1915 = vrsqrt.pop %v1913
    %v1916 = vmul.f32 %v1900, %v1914
    %v1917 = vmul.f32 %v1901, %v1915
    %v1918 = vlaneseq
    %v1919 = vshrl.u32 %v1918, 7
    %v1920 = vsub.s32 0, %v1919
    %v1921 = vrot.slane %v1890, %v1920
    %v1922 = vmul.f32 %v1916, %v1921
    %v1923 = vmul.f32 %v1917, %v1921
    %v1924 = vlaneseq
    %v1925 = vshrl.u32 %v1924, 7
    %v1926 = vsub.s32 0, %v1925
    %v1927 = vrot.slane %v1891, %v1926
    %v1928 = vadd.f32 %v1922, %v1927
    %v1929 = vadd.f32 %v1923, %v1927
    %v1930 = vld [vmem:[%s7] sm:$0xff]
    %v1931 = vld [vmem:[%s7 + $0x8] sm:$0xff]
    %v1932 = vld [vmem:[%s7 + $0x10] sm:$0xff]
    %v1933 = vld [vmem:[%s7 + $0x18] sm:$0xff]
    %v1934 = vld [vmem:[%s7 + $0x20] sm:$0x1]
    %v1935 = vlaneseq
    %v1936 = vshrl.u32 %v1935, 7
    %v1937 = vsub.s32 0, %v1936
    %v1938 = vrot.slane %v1934, %v1937
    %v1940 = vsel %vm46, %v1928, 0
    %v1943 = vsel %vm46, %v1929, 0
    %1945 = vmatprep.subr.mxu0 0.0
    %1946 = vmatpush1.msra.mxu0 %v1930
    %1947 = vmatprep.subr.mxu0 0.0
    %1948 = vmatpush1.msra.mxu0 %v1931
    %1949 = vmatprep.subr.mxu0 0.0
    %1950 = vmatpush1.msra.mxu0 %v1932
    %1951 = vmatprep.subr.mxu0 0.0
    %1952 = vmatpush1.msra.mxu0 %v1933
    %1953 = vmatprep.subr.mxu0 0.0
    %1954 = vmatpush1.msra.mxu0 0.0
    %1955 = vmatprep.subr.mxu0 0.0
    %1956 = vmatpush1.msra.mxu0 0.0
    %1957 = vmatprep.subr.mxu0 0.0
    %1958 = vmatpush1.msra.mxu0 0.0
    %1959 = vmatprep.subr.mxu0 0.0
    %1960 = vmatpush1.msra.mxu0 0.0
    %1961 = vmatprep.subr.mxu0 0.0
    %1962 = vmatpush1.msra.mxu0 0.0
    %1963 = vmatprep.subr.mxu0 0.0
    %1964 = vmatpush1.msra.mxu0 0.0
    %1965 = vmatprep.subr.mxu0 0.0
    %1966 = vmatpush1.msra.mxu0 0.0
    %1967 = vmatprep.subr.mxu0 0.0
    %1968 = vmatpush1.msra.mxu0 0.0
    %1969 = vmatprep.subr.mxu0 0.0
    %1970 = vmatpush1.msra.mxu0 0.0
    %1971 = vmatprep.subr.mxu0 0.0
    %1972 = vmatpush1.msra.mxu0 0.0
    %1973 = vmatprep.subr.mxu0 0.0
    %1974 = vmatpush1.msra.mxu0 0.0
    %1975 = vmatprep.subr.mxu0 0.0
    %1976 = vmatpush1.msra.mxu0 0.0
    %1977 = vmatprep.subr.mxu0 0.0
    %1978 = vmatpush1.msra.mxu0 0.0
    %1979 = vmatprep.subr.mxu0 0.0
    %1980 = vmatpush1.msra.mxu0 0.0
    %1981 = vmatprep.subr.mxu0 0.0
    %1982 = vmatpush1.msra.mxu0 0.0
    %1983 = vmatprep.subr.mxu0 0.0
    %1984 = vmatpush1.msra.mxu0 0.0
    %1985 = vmatprep.subr.mxu0 0.0
    %1986 = vmatpush1.msra.mxu0 0.0
    %1987 = vmatprep.subr.mxu0 0.0
    %1988 = vmatpush1.msra.mxu0 0.0
    %1989 = vmatprep.subr.mxu0 0.0
    %1990 = vmatpush1.msra.mxu0 0.0
    %1991 = vmatprep.subr.mxu0 0.0
    %1992 = vmatpush1.msra.mxu0 0.0
    %1993 = vmatprep.subr.mxu0 0.0
    %1994 = vmatpush1.msra.mxu0 0.0
    %1995 = vmatprep.subr.mxu0 0.0
    %1996 = vmatpush1.msra.mxu0 0.0
    %1997 = vmatprep.subr.mxu0 0.0
    %1998 = vmatpush1.msra.mxu0 0.0
    %1999 = vmatprep.subr.mxu0 0.0
    %2000 = vmatpush1.msra.mxu0 0.0
    %2001 = vmatprep.subr.mxu0 0.0
    %2002 = vmatpush1.msra.mxu0 0.0
    %2003 = vmatprep.subr.mxu0 0.0
    %2004 = vmatpush1.msra.mxu0 0.0
    %2005 = vmatprep.subr.mxu0 0.0
    %2006 = vmatpush1.msra.mxu0 0.0
    %2007 = vmatprep.subr.mxu0 0.0
    %2008 = vmatpush1.msra.mxu0 0.0
    %2009 = vmatprep.mubr.f32.mxu0 0.0
    %2010 = vmatmul.mubr.f32.gmra.mrb[0].mxu0 %v1940
    %v2011 = vpop.f32.mrb[0].mxu0
    %v2012 = vadd.f32 %v1938, %v2011
    %v2013 = vpop.f32.mrb[0].mxu0
    %2014 = vmatprep.mubr.f32.mxu0 0.0
    %2015 = vmatmul.mubr.f32.gmra.mrb[0].mxu0 %v1943
    %v2016 = vpop.f32.mrb[0].mxu0
    %v2017 = vadd.f32 %v1938, %v2016
    %v2018 = vpop.f32.mrb[0].mxu0
    %2019 = vdwg.mxu0
    %2020 = vmax.xlane.f32.xlu0 %v2012
    %v2021 = vpop.xlane.xlu0 %2020
    %2022 = vmax.xlane.f32.xlu0 %v2017
    %v2023 = vpop.xlane.xlu0 %2022
    %v2024 = vsub.f32 %v2012, %v2021
    %v2025 = vsub.f32 %v2017, %v2023
    %v2026 = vmul.f32 %v2024, 1.442695
    %v2027 = vpow.pop %v2026
    %v2028 = vmul.f32 %v2025, 1.442695
    %v2029 = vpow.pop %v2028
    %2030 = vadd.xlane.f32.xlu0 %v2027
    %v2031 = vpop.xlane.xlu0 %2030
    %2032 = vadd.xlane.f32.xlu0 %v2029
    %v2033 = vpop.xlane.xlu0 %2032
    %v2034 = vlog2.pop %v2031
    %v2035 = vmul.f32 %v2034, 0.6931472
    %v2036 = vlog2.pop %v2033
    %v2037 = vmul.f32 %v2036, 0.6931472
    %v2038 = vsub.f32 %v2024, %v2035
    %v2039 = vsub.f32 %v2025, %v2037
    %2040 = vst [vmem:[%s10] sm:$0xff] %v2038
    %2041 = vst [vmem:[%s10 + $0x8] sm:$0xff] %v2039
    %v2042 = vrot.slane %v1929, 7
    %vm2044 = vcmask 1040384
    %v2045 = vsel %vm2044, %v1928, %v2042
    %v2046 = vld [vmem:[%s8] sm:$0xff]
    %v2047 = vld [vmem:[%s8 + $0x8] sm:$0xff]
    %v2048 = vld [vmem:[%s8 + $0x10] sm:$0xff]
    %v2049 = vld [vmem:[%s8 + $0x18] sm:$0xff]
    %v2050 = vld [vmem:[%s8 + $0x20] sm:$0x1]
    %v2051 = vlaneseq
    %v2052 = vshrl.u32 %v2051, 7
    %v2053 = vsub.s32 0, %v2052
    %v2054 = vrot.slane %v2050, %v2053
    %v2056 = vsel %vm46, %v2045, 0
    %2058 = vmatprep.subr.mxu0 0.0
    %2059 = vmatpush1.msra.mxu0 %v2046
    %2060 = vmatprep.subr.mxu0 0.0
    %2061 = vmatpush1.msra.mxu0 %v2047
    %2062 = vmatprep.subr.mxu0 0.0
    %2063 = vmatpush1.msra.mxu0 %v2048
    %2064 = vmatprep.subr.mxu0 0.0
    %2065 = vmatpush1.msra.mxu0 %v2049
    %2066 = vmatprep.subr.mxu0 0.0
    %2067 = vmatpush1.msra.mxu0 0.0
    %2068 = vmatprep.subr.mxu0 0.0
    %2069 = vmatpush1.msra.mxu0 0.0
    %2070 = vmatprep.subr.mxu0 0.0
    %2071 = vmatpush1.msra.mxu0 0.0
    %2072 = vmatprep.subr.mxu0 0.0
    %2073 = vmatpush1.msra.mxu0 0.0
    %2074 = vmatprep.subr.mxu0 0.0
    %2075 = vmatpush1.msra.mxu0 0.0
    %2076 = vmatprep.subr.mxu0 0.0
    %2077 = vmatpush1.msra.mxu0 0.0
    %2078 = vmatprep.subr.mxu0 0.0
    %2079 = vmatpush1.msra.mxu0 0.0
    %2080 = vmatprep.subr.mxu0 0.0
    %2081 = vmatpush1.msra.mxu0 0.0
    %2082 = vmatprep.subr.mxu0 0.0
    %2083 = vmatpush1.msra.mxu0 0.0
    %2084 = vmatprep.subr.mxu0 0.0
    %2085 = vmatpush1.msra.mxu0 0.0
    %2086 = vmatprep.subr.mxu0 0.0
    %2087 = vmatpush1.msra.mxu0 0.0
    %2088 = vmatprep.subr.mxu0 0.0
    %2089 = vmatpush1.msra.mxu0 0.0
    %2090 = vmatprep.subr.mxu0 0.0
    %2091 = vmatpush1.msra.mxu0 0.0
    %2092 = vmatprep.subr.mxu0 0.0
    %2093 = vmatpush1.msra.mxu0 0.0
    %2094 = vmatprep.subr.mxu0 0.0
    %2095 = vmatpush1.msra.mxu0 0.0
    %2096 = vmatprep.subr.mxu0 0.0
    %2097 = vmatpush1.msra.mxu0 0.0
    %2098 = vmatprep.subr.mxu0 0.0
    %2099 = vmatpush1.msra.mxu0 0.0
    %2100 = vmatprep.subr.mxu0 0.0
    %2101 = vmatpush1.msra.mxu0 0.0
    %2102 = vmatprep.subr.mxu0 0.0
    %2103 = vmatpush1.msra.mxu0 0.0
    %2104 = vmatprep.subr.mxu0 0.0
    %2105 = vmatpush1.msra.mxu0 0.0
    %2106 = vmatprep.subr.mxu0 0.0
    %2107 = vmatpush1.msra.mxu0 0.0
    %2108 = vmatprep.subr.mxu0 0.0
    %2109 = vmatpush1.msra.mxu0 0.0
    %2110 = vmatprep.subr.mxu0 0.0
    %2111 = vmatpush1.msra.mxu0 0.0
    %2112 = vmatprep.subr.mxu0 0.0
    %2113 = vmatpush1.msra.mxu0 0.0
    %2114 = vmatprep.subr.mxu0 0.0
    %2115 = vmatpush1.msra.mxu0 0.0
    %2116 = vmatprep.subr.mxu0 0.0
    %2117 = vmatpush1.msra.mxu0 0.0
    %2118 = vmatprep.subr.mxu0 0.0
    %2119 = vmatpush1.msra.mxu0 0.0
    %2120 = vmatprep.subr.mxu0 0.0
    %2121 = vmatpush1.msra.mxu0 0.0
    %2122 = vmatprep.mubr.f32.mxu0 0.0
    %2123 = vmatmul.mubr.f32.gmra.mrb[0].mxu0 %v2056
    %v2124 = vpop.f32.mrb[0].mxu0
    %v2125 = vadd.f32 %v2054, %v2124
    %v2126 = vpop.f32.mrb[0].mxu0
    %2127 = vdwg.mxu0
    %vm2128 = vcmask 9216
    %v2129 = vsel %vm2128, %v2125, -inf
    %2130 = vmax.xlane.f32.xlu0 %v2129
    %v2131 = vpop.xlane.xlu0 %2130
    %v2132 = vsub.f32 %v2125, %v2131
    %v2133 = vmul.f32 %v2132, 1.442695
    %v2134 = vpow.pop %v2133
    %v2135 = vsel %vm2128, %v2134, 0.0
    %2136 = vadd.xlane.f32.xlu0 %v2135
    %v2137 = vpop.xlane.xlu0 %2136
    %v2138 = vlog2.pop %v2137
    %v2139 = vmul.f32 %v2138, 0.6931472
    %v2140 = vsub.f32 %v2132, %v2139
    %2141 = vst.msk [vmem:[#allocation2] sm:$0x3] %vm2128, %v2140
    // Predicated region
    $region38: #{bert_pretrain_forward.1} parent=1 // pred_check
      _
    $region39: #{bert_pretrain_forward.1} parent=1 // pred_check_branch
      %2143 = sbr.rel (0) target = $region41
    $region40: #{bert_pretrain_forward.1} parent=1 // pred_region
      %s2145 = ssub.s32 32, 32
      %2146 = vsyncadd [#allocation3], %s2145
      %s2148 = sshll.u32 [#allocation2], 4
      %s2149 = int_to_ptr.vmem [resolvable:$true] %s2148
      %2151 = dma.vmem_to_hbm [thread:$0]  %s2149, 32, %s9, [#allocation3]
    $region41: #{bert_pretrain_forward.1} parent=1 // pred_fallthru
      _
    // Predicated region
    $region42: #{bert_pretrain_forward.1} parent=1 // pred_check
      _
    $region43: #{bert_pretrain_forward.1} parent=1 // pred_check_branch
      %2153 = sbr.rel (0) target = $region45
    $region44: #{bert_pretrain_forward.1} parent=1 // pred_region
      _
    $region45: #{bert_pretrain_forward.1} parent=1 // pred_fallthru
      _
    // Predicated region
    $region46: #{bert_pretrain_forward.1} parent=1 // pred_check
      _
    $region47: #{bert_pretrain_forward.1} parent=1 // pred_check_branch
      %2155 = sbr.rel (0) target = $region49
    $region48: #{bert_pretrain_forward.1} parent=1 // pred_region
      %2156 = dma.done [#allocation3], 32
    $region49: #{bert_pretrain_forward.1} parent=1 // pred_fallthru
      _
    // Predicated region
    $region50: #{bert_pretrain_forward.1} parent=1 // pred_check
      _
    $region51: #{bert_pretrain_forward.1} parent=1 // pred_check_branch
      %2158 = sbr.rel (0) target = $region53
    $region52: #{bert_pretrain_forward.1} parent=1 // pred_region
      _
    $region53: #{bert_pretrain_forward.1} parent=1 // pred_fallthru
      _
    %2159 = vsyncpa [#allocation3], 1

</llo_original>
